<compile_context>
chip_gen: v5e
topology: v5e:2x2
jax: 0.10.0
libtpu: 0.0.40
codegen_flags: <defaults>
</compile_context>

<pallas_src>
import functools

import jax
import jax.numpy as jnp
from jax.experimental import pallas as pl
from jax.experimental.pallas import tpu as pltpu

LANE = 128                         # channel dims padded to lane multiples
ROW_PAD = 256                      # node (row) dims padded to this multiple
TILE_MAX = 512                     # preferred dst/src tile when shape allows
XS_RESIDENT_BYTES = 4 * 1024 * 1024  # keep x_src VMEM-resident up to this size


def _round_up(n, m):
    return ((n + m - 1) // m) * m


def _pad2(x, rows, cols):
    return jnp.pad(x, ((0, rows - x.shape[0]), (0, cols - x.shape[1])))


def _pick_tile(n_padded):
    """Largest of (TILE_MAX, ROW_PAD) dividing the padded row count."""
    return TILE_MAX if n_padded % TILE_MAX == 0 else ROW_PAD


def _sage_conv_kernel(bids_ref, cnts_ref, a_ref, xs_ref, xd_ref, scale_ref,
                      wl_ref, wr_ref, b_ref, o_ref, acc_ref, root_ref, *,
                      apply_relu, fuse_log_softmax, c_out, tk, xs_resident):
    i = pl.program_id(0)
    k = pl.program_id(1)

    @pl.when(k == 0)
    def _():
        # Zero the neighbor-sum accumulator and compute the root term
        # x_dst @ W_r^T + b up-front so the final k step's epilogue is short.
        acc_ref[...] = jnp.zeros_like(acc_ref)
        root_ref[...] = (
            jnp.dot(xd_ref[...], wr_ref[...], preferred_element_type=jnp.float32)
            + b_ref[...])

    # Block-sparse reduction: only the first cnts[i] slots of this dst strip
    # point at adjacency tiles with any nonzero edge; trailing slots repeat the
    # last valid tile id (no extra DMA) and are skipped here.
    @pl.when(k < cnts_ref[i])
    def _():
        # A is stored as int8 neighbor counts (exact); widen to bf16 for the
        # MXU via a conservative i8 -> i32 -> f32 -> bf16 cast chain.
        a = (a_ref[...].astype(jnp.int32).astype(jnp.float32)
             .astype(jnp.bfloat16))
        if xs_resident:
            kb = bids_ref[i, k]
            start = pl.multiple_of(kb * tk, tk)
            xs = xs_ref[pl.ds(start, tk), :]
        else:
            xs = xs_ref[...]
        acc_ref[...] += jnp.dot(a, xs, preferred_element_type=jnp.float32)

    @pl.when(k == pl.num_programs(1) - 1)
    def _():
        tm, _ = root_ref.shape
        rc = 128 if tm > 128 else tm
        # 128-row chunks keep the f32 epilogue live set inside the vreg file
        # even at TM = 512.
        for r0 in range(0, tm, rc):
            rows = pl.ds(r0, rc)
            # Per-dst-row 1/deg scale applied in f32 -> exact mean aggregation.
            agg = (acc_ref[rows, :] * scale_ref[rows, :]).astype(jnp.bfloat16)
            out = root_ref[rows, :] + jnp.dot(
                agg, wl_ref[...], preferred_element_type=jnp.float32)
            if apply_relu:
                out = jnp.maximum(out, 0.0)
            if fuse_log_softmax:
                # Fused log_softmax over the real classes; padded lanes masked.
                lane = jax.lax.broadcasted_iota(jnp.int32, out.shape, 1)
                out = jnp.where(lane < c_out, out, -1e30)
                m = jnp.max(out, axis=-1, keepdims=True)
                z = out - m
                lse = jnp.log(jnp.sum(jnp.exp(z), axis=-1, keepdims=True))
                out = z - lse
            o_ref[rows, :] = out.astype(o_ref.dtype)


def sage_conv(a_i8, x_pad, scale, block_ids, block_cnt, w_l_t, w_r_t, b, *,
              tm, tk, apply_relu, fuse_log_softmax, c_out, out_dtype):
    """One SAGEConv layer on padded operands.

    a_i8:       (n_dst_p, n_src_p) int8 edge-count adjacency (exact)
    x_pad:      (n_src_p, c_in_p)  bf16 source features (dst rows are a prefix)
    scale:      (n_dst_p, 1)       f32 per-dst-row 1/deg
    block_ids:  (grid_i, max_blk)  int32 nonzero k-tile ids per dst strip
    block_cnt:  (grid_i,)          int32 valid entries in block_ids per strip
    w_l_t/w_r_t:(c_in_p, c_out_p)  bf16 pre-transposed weights; b: (1, c_out_p)
    """
    n_dst_p, n_src_p = a_i8.shape
    c_in_p = x_pad.shape[1]
    c_out_p = w_l_t.shape[1]
    assert n_dst_p % tm == 0 and n_src_p % tk == 0
    assert x_pad.shape[0] == n_src_p
    assert w_r_t.shape == (c_in_p, c_out_p) and b.shape == (1, c_out_p)
    # Fused log_softmax is only valid with the whole class dim in one block.
    assert c_out <= c_out_p

    grid_i = n_dst_p // tm
    max_blocks = block_ids.shape[1]
    assert block_ids.shape[0] == grid_i and block_cnt.shape == (grid_i,)
    grid = (grid_i, max_blocks)

    xs_resident = x_pad.size * x_pad.dtype.itemsize <= XS_RESIDENT_BYTES
    if xs_resident:
        # Whole feature slab DMA'd once, VMEM-resident for the entire layer.
        xs_spec = pl.BlockSpec((n_src_p, c_in_p),
                               lambda i, k, bids, cnts: (0, 0))
    else:
        # Streamed per slot, data-dependent on the block-sparse schedule.
        xs_spec = pl.BlockSpec((tk, c_in_p),
                               lambda i, k, bids, cnts: (bids[i, k], 0))

    nnz_blocks = int(jnp.sum(block_cnt))
    flops = (2 * nnz_blocks * tm * tk * c_in_p          # neighbor aggregation
             + 4 * n_dst_p * c_in_p * c_out_p)          # two projections
    transcendentals = n_dst_p * c_out_p if fuse_log_softmax else 0
    xs_bytes = (x_pad.size * x_pad.dtype.itemsize if xs_resident
                else nnz_blocks * tk * c_in_p * 2)
    bytes_accessed = (nnz_blocks * tm * tk                         # int8 A
                      + xs_bytes
                      + n_dst_p * c_in_p * 2                       # x_dst
                      + n_dst_p * 4                                # scale
                      + 2 * c_in_p * c_out_p * 2 + c_out_p * 4     # weights + b
                      + n_dst_p * c_out_p * jnp.dtype(out_dtype).itemsize)

    kernel = functools.partial(
        _sage_conv_kernel, apply_relu=apply_relu,
        fuse_log_softmax=fuse_log_softmax, c_out=c_out, tk=tk,
        xs_resident=xs_resident)

    return pl.pallas_call(
        kernel,
        out_shape=jax.ShapeDtypeStruct((n_dst_p, c_out_p), out_dtype),
        grid_spec=pltpu.PrefetchScalarGridSpec(
            num_scalar_prefetch=2,
            grid=grid,
            in_specs=[
                pl.BlockSpec((tm, tk),
                             lambda i, k, bids, cnts: (i, bids[i, k])),   # A
                xs_spec,                                                  # x_src
                pl.BlockSpec((tm, c_in_p),
                             lambda i, k, bids, cnts: (i, 0)),            # x_dst
                pl.BlockSpec((tm, 1),
                             lambda i, k, bids, cnts: (i, 0)),            # 1/deg
                pl.BlockSpec((c_in_p, c_out_p),
                             lambda i, k, bids, cnts: (0, 0)),            # W_l^T
                pl.BlockSpec((c_in_p, c_out_p),
                             lambda i, k, bids, cnts: (0, 0)),            # W_r^T
                pl.BlockSpec((1, c_out_p),
                             lambda i, k, bids, cnts: (0, 0)),            # bias
            ],
            out_specs=pl.BlockSpec((tm, c_out_p),
                                   lambda i, k, bids, cnts: (i, 0)),
            scratch_shapes=[pltpu.VMEM((tm, c_in_p), jnp.float32),   # agg acc
                            pltpu.VMEM((tm, c_out_p), jnp.float32)], # root term
        ),
        compiler_params=pltpu.CompilerParams(
            dimension_semantics=("parallel", "arbitrary"),
            vmem_limit_bytes=32 * 1024 * 1024),
        cost_estimate=pl.CostEstimate(flops=int(flops),
                                      transcendentals=int(transcendentals),
                                      bytes_accessed=int(bytes_accessed)),
    )(block_ids, block_cnt, a_i8, x_pad, x_pad, scale, w_l_t, w_r_t, b)


def build_adj_counts(edge_index, n_src, n_dst):
    """Dense edge-count matrix (f32) from COO edge_index (row 0 = source ids,
    row 1 = destination ids).  Duplicate edges count in numerator and
    denominator (PyG scatter-mean semantics); isolated targets aggregate to 0."""
    src, dst = edge_index[0], edge_index[1]
    return jnp.zeros((n_dst, n_src), jnp.float32).at[dst, src].add(1.0)


def build_block_schedule(counts_pad, tm, tk):
    """Per dst strip: k-tile indices of A with any nonzero, padded by repeating
    the last valid index (kernel gates trailing slots via the count)."""
    gi, gk = counts_pad.shape[0] // tm, counts_pad.shape[1] // tk
    blk = (counts_pad.reshape(gi, tm, gk, tk) > 0).any(axis=(1, 3))   # (gi, gk)
    cnt = blk.sum(axis=1).astype(jnp.int32)
    max_blocks = int(jnp.maximum(jnp.max(cnt), 1))
    order = jnp.argsort(jnp.where(blk, 0, 1), axis=1)[:, :max_blocks]
    slot = jnp.arange(max_blocks)[None, :]
    safe_slot = jnp.minimum(slot, jnp.maximum(cnt - 1, 0)[:, None])
    ids = jnp.take_along_axis(order, safe_slot, axis=1).astype(jnp.int32)
    return ids, cnt


def prepare_adjacency(counts):
    """Pad, split the mean into (int8 counts, f32 per-row 1/deg), pick tiles and
    precompute the block-sparse reduction schedule.  Done once per minibatch."""
    n_dst, n_src = counts.shape
    n_dst_p, n_src_p = _round_up(n_dst, ROW_PAD), _round_up(n_src, ROW_PAD)
    tm, tk = _pick_tile(n_dst_p), _pick_tile(n_src_p)
    counts_pad = _pad2(counts, n_dst_p, n_src_p)
    # Edge counts are small integers -> exact in int8 (assumes < 128 duplicate
    # edges per (dst, src) pair); halves A's HBM traffic vs bf16.
    a_i8 = counts_pad.astype(jnp.int8)
    deg = counts.sum(axis=1, keepdims=True)
    scale = _pad2(1.0 / jnp.maximum(deg, 1.0), n_dst_p, 1).astype(jnp.float32)
    block_ids, block_cnt = build_block_schedule(counts_pad, tm, tk)
    return a_i8, scale, block_ids, block_cnt, tm, tk, n_dst, n_src


def init_sage_params(key, in_channels, hidden_channels, out_channels,
                     num_layers):
    """Deterministic synthetic init, torch layout (out, in); lin_l has bias."""
    dims = [in_channels] + [hidden_channels] * (num_layers - 1) + [out_channels]
    params = []
    for i in range(num_layers):
        c_in, c_out = dims[i], dims[i + 1]
        key, k1, k2, k3 = jax.random.split(key, 4)
        scale = 1.0 / jnp.sqrt(jnp.float32(c_in))
        w_l = jax.random.uniform(k1, (c_out, c_in), jnp.float32, -scale, scale)
        w_r = jax.random.uniform(k2, (c_out, c_in), jnp.float32, -scale, scale)
        b_l = jax.random.uniform(k3, (c_out,), jnp.float32, -scale, scale)
        params.append((w_l, b_l, w_r))
    return params


def prepare_params(params_raw):
    """Pad channel dims to lane multiples, pre-transpose to (in, out), cast to
    bf16 — done once, outside the per-forward path."""
    prepared = []
    for w_l, b_l, w_r in params_raw:
        c_out, c_in = w_l.shape
        ci_p, co_p = _round_up(c_in, LANE), _round_up(c_out, LANE)
        w_l_t = _pad2(w_l.T, ci_p, co_p).astype(jnp.bfloat16)
        w_r_t = _pad2(w_r.T, ci_p, co_p).astype(jnp.bfloat16)
        b = _pad2(b_l.reshape(1, -1), 1, co_p).astype(jnp.float32)
        prepared.append((w_l_t, w_r_t, b, c_out))
    return prepared


def sage_forward(x, adjs, params_k, num_layers):
    """Mirrors SAGE.forward in eval mode."""
    n_real = x.shape[0]
    h = _pad2(x, _round_up(x.shape[0], ROW_PAD),
              _round_up(x.shape[1], LANE)).astype(jnp.bfloat16)
    n_out = c_out_final = None
    for i, (a_i8, scale, bids, cnt, tm, tk, n_dst, n_src) in enumerate(adjs):
        last = i == num_layers - 1
        w_l_t, w_r_t, b, c_out = params_k[i]
        # PyG bipartite sampler convention: dst nodes are the first n_dst rows
        # of the src feature matrix (x_target = x[:n_dst]).
        assert n_src == n_real and n_dst <= n_src
        assert a_i8.shape[1] == h.shape[0], "padded n_src must match x rows"
        # NOTE(v7x): for megacore utilization grid_i should be >= 2; tiny final
        # hops (n_dst < 512) collapse to a single dst strip.
        h = sage_conv(a_i8, h, scale, bids, cnt, w_l_t, w_r_t, b,
                      tm=tm, tk=tk, apply_relu=not last,
                      fuse_log_softmax=last, c_out=c_out,
                      out_dtype=jnp.float32 if last else jnp.bfloat16)
        # F.dropout(p=0.5, training=...): identity in eval mode.
        # TODO(synk): training-mode dropout (pltpu PRNG) not reproduced.
        n_real = n_dst
        n_out, c_out_final = n_dst, c_out
    return h[:n_out, :c_out_final]


def sage_reference(x, counts_list, params_raw, num_layers):
    """Pure-JAX f32 reference with identical semantics."""
    h = x
    for i, counts in enumerate(counts_list):
        w_l, b_l, w_r = params_raw[i]
        n_dst = counts.shape[0]
        deg = counts.sum(axis=1, keepdims=True)
        a = counts / jnp.maximum(deg, 1.0)
        out = (a @ h) @ w_l.T + h[:n_dst] @ w_r.T + b_l
        if i != num_layers - 1:
            out = jnp.maximum(out, 0.0)
        h = out
    return jax.nn.log_softmax(h, axis=-1)


if __name__ == "__main__":
    key = jax.random.PRNGKey(0)

    in_channels, hidden_channels, out_channels = 16, 32, 8
    num_layers = 2
    # Sampled node counts per hop (n0 >= n1 >= n2); chosen so the first layer
    # has multiple dst strips and multiple src tiles.
    n0, n1, n2 = 700, 600, 60
    e0, e1 = 3000, 1000

    kx, kd0, ks0, kd1, ks1, kp = jax.random.split(key, 6)
    x = jax.random.normal(kx, (n0, in_channels), jnp.float32)

    # Bipartite edge_index per hop: row 0 = source ids, row 1 = target ids.
    dst0 = jax.random.randint(kd0, (e0,), 0, n1)
    # Banded sources (src <= dst) so some (dst-strip, src-tile) blocks are
    # empty — exercises the block-sparse schedule and the gated accumulation.
    src0 = jax.random.randint(ks0, (e0,), 0, jnp.maximum(dst0 + 1, 1))
    edge_index_0 = jnp.stack([src0, dst0])

    dst1 = jax.random.randint(kd1, (e1,), 0, n2)
    src1 = jax.random.randint(ks1, (e1,), 0, n1)
    edge_index_1 = jnp.stack([src1, dst1])

    counts0 = build_adj_counts(edge_index_0, n0, n1)
    counts1 = build_adj_counts(edge_index_1, n1, n2)

    adjs = [prepare_adjacency(counts0), prepare_adjacency(counts1)]
    params_raw = init_sage_params(kp, in_channels, hidden_channels,
                                  out_channels, num_layers)
    params_k = prepare_params(params_raw)

    out = sage_forward(x, adjs, params_k, num_layers)
    jax.block_until_ready(out)

    ref = sage_reference(x, [counts0, counts1], params_raw, num_layers)
    assert out.shape == (n2, out_channels)
    assert bool(jnp.all(jnp.isfinite(out)))
    assert bool(jnp.allclose(out, ref, atol=5e-2, rtol=5e-2)), (
        float(jnp.max(jnp.abs(out - ref))))
    print("KERNEL_OK")
</pallas_src>

<mosaic_0001>
module attributes {stable_mosaic.version = 11 : i64} {
  func.func @_sage_conv_kernel(%arg0: i32, %arg1: i32, %arg2: memref<3x3xi32, #tpu.memory_space<smem>>, %arg3: memref<3xi32, #tpu.memory_space<smem>>, %arg4: memref<256x256xi8, #tpu.memory_space<vmem>>, %arg5: memref<768x128xbf16, #tpu.memory_space<vmem>>, %arg6: memref<256x128xbf16, #tpu.memory_space<vmem>>, %arg7: memref<256x1xf32, #tpu.memory_space<vmem>>, %arg8: memref<128x128xbf16, #tpu.memory_space<vmem>>, %arg9: memref<128x128xbf16, #tpu.memory_space<vmem>>, %arg10: memref<1x128xf32, #tpu.memory_space<vmem>>, %arg11: memref<256x128xbf16, #tpu.memory_space<vmem>>, %arg12: memref<256x128xf32, #tpu.memory_space<vmem>>, %arg13: memref<256x128xf32, #tpu.memory_space<vmem>>) attributes {dimension_semantics = [#tpu.dimension_semantics<parallel>, #tpu.dimension_semantics<arbitrary>], iteration_bounds = array<i64: 3, 3>, scalar_prefetch = 2 : i64, scratch_operands = 2 : i64, tpu.core_type = #tpu.core_type<tc>, window_params = [{transform_indices = @transform_0, window_bounds = array<i64: 256, 256>}, {pipeline_mode = #tpu.pipeline_mode<synchronous>, transform_indices = @transform_1, window_bounds = array<i64: 768, 128>}, {transform_indices = @transform_2, window_bounds = array<i64: 256, 128>}, {transform_indices = @transform_3, window_bounds = array<i64: 256, 1>}, {pipeline_mode = #tpu.pipeline_mode<synchronous>, transform_indices = @transform_4, window_bounds = array<i64: 128, 128>}, {pipeline_mode = #tpu.pipeline_mode<synchronous>, transform_indices = @transform_5, window_bounds = array<i64: 128, 128>}, {pipeline_mode = #tpu.pipeline_mode<synchronous>, transform_indices = @transform_6, window_bounds = array<i64: 1, 128>}, {transform_indices = @transform_7, window_bounds = array<i64: 256, 128>}]} {
    %c0_i32 = arith.constant 0 : i32
    %0 = arith.cmpi eq, %arg1, %c0_i32 : i32
    %1 = arith.extui %0 : i1 to i32
    %c0_i32_0 = arith.constant 0 : i32
    %2 = arith.cmpi ne, %1, %c0_i32_0 : i32
    scf.if %2 {
      %cst = arith.constant 0.000000e+00 : f32
      %11 = vector.broadcast %cst : f32 to vector<256x128xf32>
      %c0 = arith.constant 0 : index
      %c0_3 = arith.constant 0 : index
      %12 = vector.load %arg12[%c0, %c0_3] : memref<256x128xf32, #tpu.memory_space<vmem>>, vector<256x128xf32>
      tpu.vector_store %arg12[%c0, %c0_3], %11 {strides = array<i32>} : memref<256x128xf32, #tpu.memory_space<vmem>>, vector<256x128xf32>,
      %c0_4 = arith.constant 0 : index
      %c0_5 = arith.constant 0 : index
      %13 = vector.load %arg6[%c0_4, %c0_5] : memref<256x128xbf16, #tpu.memory_space<vmem>>, vector<256x128xbf16>
      %c0_6 = arith.constant 0 : index
      %c0_7 = arith.constant 0 : index
      %14 = vector.load %arg9[%c0_6, %c0_7] : memref<128x128xbf16, #tpu.memory_space<vmem>>, vector<128x128xbf16>
      %cst_8 = arith.constant dense<0.000000e+00> : vector<256x128xf32>
      %15 = tpu.matmul %13, %14, %cst_8 {dimension_numbers = #tpu.dot_dimension_numbers<[1], [0], [0], [1], [0, 0, 1, 1], [], []>} : vector<256x128xbf16>, vector<128x128xbf16>, vector<256x128xf32> -> vector<256x128xf32>
      %c0_9 = arith.constant 0 : index
      %c0_10 = arith.constant 0 : index
      %16 = vector.load %arg10[%c0_9, %c0_10] : memref<1x128xf32, #tpu.memory_space<vmem>>, vector<1x128xf32>
      %17 = vector.broadcast %16 : vector<1x128xf32> to vector<256x128xf32>
      %18 = arith.addf %15, %17 : vector<256x128xf32>
      %c0_11 = arith.constant 0 : index
      %c0_12 = arith.constant 0 : index
      %19 = vector.load %arg13[%c0_11, %c0_12] : memref<256x128xf32, #tpu.memory_space<vmem>>, vector<256x128xf32>
      tpu.vector_store %arg13[%c0_11, %c0_12], %18 {strides = array<i32>} : memref<256x128xf32, #tpu.memory_space<vmem>>, vector<256x128xf32>,
    } else {
    }
    %3 = arith.index_cast %arg0 : i32 to index
    %4 = memref.load %arg3[%3] : memref<3xi32, #tpu.memory_space<smem>>
    %5 = arith.cmpi slt, %arg1, %4 : i32
    %6 = arith.extui %5 : i1 to i32
    %c0_i32_1 = arith.constant 0 : i32
    %7 = arith.cmpi ne, %6, %c0_i32_1 : i32
    scf.if %7 {
      %c0 = arith.constant 0 : index
      %c0_3 = arith.constant 0 : index
      %11 = vector.load %arg4[%c0, %c0_3] : memref<256x256xi8, #tpu.memory_space<vmem>>, vector<256x256xi8>
      %12 = arith.extsi %11 : vector<256x256xi8> to vector<256x256xi32>
      %13 = arith.sitofp %12 : vector<256x256xi32> to vector<256x256xf32>
      %14 = arith.truncf %13 : vector<256x256xf32> to vector<256x256xbf16>
      %15 = arith.index_cast %arg0 : i32 to index
      %16 = arith.index_cast %arg1 : i32 to index
      %17 = memref.load %arg2[%15, %16] : memref<3x3xi32, #tpu.memory_space<smem>>
      %c256_i32 = arith.constant 256 : i32
      %18 = arith.muli %17, %c256_i32 : i32
      %19 = tpu.assume_multiple %18, 256 : i32
      %20 = arith.index_cast %19 : i32 to index
      %c0_4 = arith.constant 0 : index
      %21 = vector.load %arg5[%20, %c0_4] : memref<768x128xbf16, #tpu.memory_space<vmem>>, vector<256x128xbf16>
      %c0_5 = arith.constant 0 : index
      %c0_6 = arith.constant 0 : index
      %22 = vector.load %arg12[%c0_5, %c0_6] : memref<256x128xf32, #tpu.memory_space<vmem>>, vector<256x128xf32>
      %cst = arith.constant dense<0.000000e+00> : vector<256x128xf32>
      %23 = tpu.matmul %14, %21, %cst {dimension_numbers = #tpu.dot_dimension_numbers<[1], [0], [0], [1], [0, 0, 1, 1], [], []>} : vector<256x256xbf16>, vector<256x128xbf16>, vector<256x128xf32> -> vector<256x128xf32>
      %24 = arith.addf %22, %23 : vector<256x128xf32>
      %c0_7 = arith.constant 0 : index
      %c0_8 = arith.constant 0 : index
      %25 = vector.load %arg12[%c0_7, %c0_8] : memref<256x128xf32, #tpu.memory_space<vmem>>, vector<256x128xf32>
      tpu.vector_store %arg12[%c0_7, %c0_8], %24 {strides = array<i32>} : memref<256x128xf32, #tpu.memory_space<vmem>>, vector<256x128xf32>,
    } else {
    }
    %c2_i32 = arith.constant 2 : i32
    %8 = arith.cmpi eq, %arg1, %c2_i32 : i32
    %9 = arith.extui %8 : i1 to i32
    %c0_i32_2 = arith.constant 0 : i32
    %10 = arith.cmpi ne, %9, %c0_i32_2 : i32
    scf.if %10 {
      %c0 = arith.constant 0 : index
      %c0_3 = arith.constant 0 : index
      %11 = vector.load %arg12[%c0, %c0_3] : memref<256x128xf32, #tpu.memory_space<vmem>>, vector<128x128xf32>
      %c0_4 = arith.constant 0 : index
      %c0_5 = arith.constant 0 : index
      %12 = vector.load %arg7[%c0_4, %c0_5] : memref<256x1xf32, #tpu.memory_space<vmem>>, vector<128x1xf32>
      %13 = vector.broadcast %12 : vector<128x1xf32> to vector<128x128xf32>
      %14 = arith.mulf %11, %13 : vector<128x128xf32>
      %15 = arith.truncf %14 : vector<128x128xf32> to vector<128x128xbf16>
      %c0_6 = arith.constant 0 : index
      %c0_7 = arith.constant 0 : index
      %16 = vector.load %arg13[%c0_6, %c0_7] : memref<256x128xf32, #tpu.memory_space<vmem>>, vector<128x128xf32>
      %c0_8 = arith.constant 0 : index
      %c0_9 = arith.constant 0 : index
      %17 = vector.load %arg8[%c0_8, %c0_9] : memref<128x128xbf16, #tpu.memory_space<vmem>>, vector<128x128xbf16>
      %cst = arith.constant dense<0.000000e+00> : vector<128x128xf32>
      %18 = tpu.matmul %15, %17, %cst {dimension_numbers = #tpu.dot_dimension_numbers<[1], [0], [0], [1], [0, 0, 1, 1], [], []>} : vector<128x128xbf16>, vector<128x128xbf16>, vector<128x128xf32> -> vector<128x128xf32>
      %19 = arith.addf %16, %18 : vector<128x128xf32>
      %cst_10 = arith.constant 0.000000e+00 : f32
      %20 = vector.broadcast %cst_10 : f32 to vector<128x128xf32>
      %21 = arith.maximumf %19, %20 : vector<128x128xf32>
      %22 = arith.truncf %21 : vector<128x128xf32> to vector<128x128xbf16>
      %c0_11 = arith.constant 0 : index
      %c0_12 = arith.constant 0 : index
      %23 = vector.load %arg11[%c0_11, %c0_12] : memref<256x128xbf16, #tpu.memory_space<vmem>>, vector<128x128xbf16>
      tpu.vector_store %arg11[%c0_11, %c0_12], %22 {strides = array<i32>} : memref<256x128xbf16, #tpu.memory_space<vmem>>, vector<128x128xbf16>,
      %c128 = arith.constant 128 : index
      %c0_13 = arith.constant 0 : index
      %24 = vector.load %arg12[%c128, %c0_13] : memref<256x128xf32, #tpu.memory_space<vmem>>, vector<128x128xf32>
      %c128_14 = arith.constant 128 : index
      %c0_15 = arith.constant 0 : index
      %25 = vector.load %arg7[%c128_14, %c0_15] : memref<256x1xf32, #tpu.memory_space<vmem>>, vector<128x1xf32>
      %26 = vector.broadcast %25 : vector<128x1xf32> to vector<128x128xf32>
      %27 = arith.mulf %24, %26 : vector<128x128xf32>
      %28 = arith.truncf %27 : vector<128x128xf32> to vector<128x128xbf16>
      %c128_16 = arith.constant 128 : index
      %c0_17 = arith.constant 0 : index
      %29 = vector.load %arg13[%c128_16, %c0_17] : memref<256x128xf32, #tpu.memory_space<vmem>>, vector<128x128xf32>
      %c0_18 = arith.constant 0 : index
      %c0_19 = arith.constant 0 : index
      %30 = vector.load %arg8[%c0_18, %c0_19] : memref<128x128xbf16, #tpu.memory_space<vmem>>, vector<128x128xbf16>
      %cst_20 = arith.constant dense<0.000000e+00> : vector<128x128xf32>
      %31 = tpu.matmul %28, %30, %cst_20 {dimension_numbers = #tpu.dot_dimension_numbers<[1], [0], [0], [1], [0, 0, 1, 1], [], []>} : vector<128x128xbf16>, vector<128x128xbf16>, vector<128x128xf32> -> vector<128x128xf32>
      %32 = arith.addf %29, %31 : vector<128x128xf32>
      %cst_21 = arith.constant 0.000000e+00 : f32
      %33 = vector.broadcast %cst_21 : f32 to vector<128x128xf32>
      %34 = arith.maximumf %32, %33 : vector<128x128xf32>
      %35 = arith.truncf %34 : vector<128x128xf32> to vector<128x128xbf16>
      %c128_22 = arith.constant 128 : index
      %c0_23 = arith.constant 0 : index
      %36 = vector.load %arg11[%c128_22, %c0_23] : memref<256x128xbf16, #tpu.memory_space<vmem>>, vector<128x128xbf16>
      tpu.vector_store %arg11[%c128_22, %c0_23], %35 {strides = array<i32>} : memref<256x128xbf16, #tpu.memory_space<vmem>>, vector<128x128xbf16>,
    } else {
    }
    return
  }
  func.func @transform_0(%arg0: i32, %arg1: i32, %arg2: memref<3x3xi32, #tpu.memory_space<smem>>, %arg3: memref<3xi32, #tpu.memory_space<smem>>) -> (i32, i32) {
    %0 = arith.index_cast %arg0 : i32 to index
    %1 = arith.index_cast %arg1 : i32 to index
    %2 = memref.load %arg2[%0, %1] : memref<3x3xi32, #tpu.memory_space<smem>>
    %c0_i32 = arith.constant 0 : i32
    return %arg0, %2 : i32, i32
  }
  func.func @transform_1(%arg0: i32, %arg1: i32, %arg2: memref<3x3xi32, #tpu.memory_space<smem>>, %arg3: memref<3xi32, #tpu.memory_space<smem>>) -> (i32, i32) {
    %c0_i32 = arith.constant 0 : i32
    %c0_i32_0 = arith.constant 0 : i32
    %c0_i32_1 = arith.constant 0 : i32
    return %c0_i32, %c0_i32_0 : i32, i32
  }
  func.func @transform_2(%arg0: i32, %arg1: i32, %arg2: memref<3x3xi32, #tpu.memory_space<smem>>, %arg3: memref<3xi32, #tpu.memory_space<smem>>) -> (i32, i32) {
    %c0_i32 = arith.constant 0 : i32
    %c0_i32_0 = arith.constant 0 : i32
    return %arg0, %c0_i32 : i32, i32
  }
  func.func @transform_3(%arg0: i32, %arg1: i32, %arg2: memref<3x3xi32, #tpu.memory_space<smem>>, %arg3: memref<3xi32, #tpu.memory_space<smem>>) -> (i32, i32) {
    %c0_i32 = arith.constant 0 : i32
    %c0_i32_0 = arith.constant 0 : i32
    return %arg0, %c0_i32 : i32, i32
  }
  func.func @transform_4(%arg0: i32, %arg1: i32, %arg2: memref<3x3xi32, #tpu.memory_space<smem>>, %arg3: memref<3xi32, #tpu.memory_space<smem>>) -> (i32, i32) {
    %c0_i32 = arith.constant 0 : i32
    %c0_i32_0 = arith.constant 0 : i32
    %c0_i32_1 = arith.constant 0 : i32
    return %c0_i32, %c0_i32_0 : i32, i32
  }
  func.func @transform_5(%arg0: i32, %arg1: i32, %arg2: memref<3x3xi32, #tpu.memory_space<smem>>, %arg3: memref<3xi32, #tpu.memory_space<smem>>) -> (i32, i32) {
    %c0_i32 = arith.constant 0 : i32
    %c0_i32_0 = arith.constant 0 : i32
    %c0_i32_1 = arith.constant 0 : i32
    return %c0_i32, %c0_i32_0 : i32, i32
  }
  func.func @transform_6(%arg0: i32, %arg1: i32, %arg2: memref<3x3xi32, #tpu.memory_space<smem>>, %arg3: memref<3xi32, #tpu.memory_space<smem>>) -> (i32, i32) {
    %c0_i32 = arith.constant 0 : i32
    %c0_i32_0 = arith.constant 0 : i32
    %c0_i32_1 = arith.constant 0 : i32
    return %c0_i32, %c0_i32_0 : i32, i32
  }
  func.func @transform_7(%arg0: i32, %arg1: i32, %arg2: memref<3x3xi32, #tpu.memory_space<smem>>, %arg3: memref<3xi32, #tpu.memory_space<smem>>) -> (i32, i32) {
    %c0_i32 = arith.constant 0 : i32
    %c0_i32_0 = arith.constant 0 : i32
    return %arg0, %c0_i32 : i32, i32
  }
}

</mosaic_0001>

<llo_original>
// kernel: tpu_custom_call.1
$region0: #{tpu_custom_call.1}
  #allocation0 [shape = 'u32[]', space=smem, size = 0x4, offset = 0x4, fixed_abs, tag = 'smem constant byte address 0x4 - core index']
  #allocation1 [shape = 'u32[72,128]{1,0:T(1,128)}', space=vmem, size = 0x9000, scoped, tag = 'internal scratch']
  #allocation2 [shape = 'f32[256,128]{1,0:T(8,128)}', space=vmem, size = 0x20000, scoped, tag = 'scratch operand']
  #allocation3 [shape = 'f32[256,128]{1,0:T(8,128)}', space=vmem, size = 0x20000, scoped, tag = 'scratch operand']
  #allocation4 [shape = 's32[1]{0}', space=sflag, size = 0x4, scoped, tag = 'scoped memory for tpu_custom_call.1']
  #allocation5 [shape = 'u8[2048]{0}', space=smem, size = 0x800, scoped, tag = 'prefetched SMEM operand 0']
  #allocation6 [shape = 'u8[512]{0}', space=smem, size = 0x200, scoped, tag = 'prefetched SMEM operand 1']
  %s0 = inlined_call_operand.vmem [shape: s32[3,3], index: 0, kind: input, shape index: {}]
  %s1 = inlined_call_operand.vmem [shape: s32[3], index: 1, kind: input, shape index: {}]
  %s2 = inlined_call_operand.hbm [shape: s8[768,768], index: 2, kind: input, shape index: {}]
  %s3 = inlined_call_operand.vmem [shape: bf16[768,128], index: 3, kind: input, shape index: {}]
  %s4 = inlined_call_operand.vmem [shape: bf16[768,128], index: 4, kind: input, shape index: {}]
  %s5 = inlined_call_operand.vmem [shape: f32[768,1], index: 5, kind: input, shape index: {}]
  %s6 = inlined_call_operand.hbm [shape: bf16[128,128], index: 6, kind: input, shape index: {}]
  %s7 = inlined_call_operand.hbm [shape: bf16[128,128], index: 7, kind: input, shape index: {}]
  %s8 = inlined_call_operand.vmem [shape: f32[1,128], index: 8, kind: input, shape index: {}]
  %s9 = inlined_call_operand.hbm [shape: bf16[768,128], index: 9, kind: output, shape index: {}]
  %s10 = sld [smem:[#allocation0]]
  $region85: #{tpu_custom_call.1} parent=0
    _
  %s12 = ssub.s32 1, %s10
  %s13 = scalar_select 0, %s12, %s10
  %s15 = sshll.u32 %s0, 4
  %s16 = int_to_ptr.vmem [resolvable:$true] %s15
  %18 = dma.vmem_to_smem %s16, 64, [#allocation5], [#allocation4]
  %s20 = sshll.u32 %s1, 4
  %s21 = int_to_ptr.vmem [resolvable:$true] %s20
  %23 = dma.vmem_to_smem %s21, 16, [#allocation6], [#allocation4]
  %25 = dma.done [#allocation4], 80
  %26 = sfence
  $region1: #{tpu_custom_call.1} parent=0
    #allocation7 [shape = 'u8[131072]{0}', space=vmem, size = 0x20000, scoped, tag = 'input window, operand 2']
    #allocation8 [shape = 's32[2]{0}', space=sflag, size = 0x8, scoped, tag = 'scoped memory for tpu_custom_call.1']
    #allocation9 [shape = 's32[2]{0}', space=sflag, size = 0x8, scoped, tag = 'scoped memory for tpu_custom_call.1']
    #allocation10 [shape = 'u8[32768]{0}', space=vmem, size = 0x8000, scoped, tag = 'input window, operand 6, single buffered']
    #allocation11 [shape = 's32[1]{0}', space=sflag, size = 0x4, scoped, tag = 'scoped memory for tpu_custom_call.1']
    #allocation12 [shape = 'u8[32768]{0}', space=vmem, size = 0x8000, scoped, tag = 'input window, operand 7, single buffered']
    #allocation13 [shape = 'u8[131072]{0}', space=vmem, size = 0x20000, scoped, tag = 'output window, operand 0']
    %27 = vsyncpa [#allocation8], 0
    %s28 = scalar_lea.sflag [#allocation8], 1
    %29 = vsyncpa %s28, 0
    %30 = vsyncpa [#allocation11], 0
    %31 = vsyncpa [#allocation9], 0
    %s32 = scalar_lea.sflag [#allocation9], 1
    %33 = vsyncpa %s32, 0
    loop: start=0, step=1, limit=11
    $region2: #{tpu_custom_call.1} parent=1 // loop_pre_header
      _
    $region3: #{tpu_custom_call.1} parent=1 // loop_header
      %s35 = sphi 0, %s39
      %p36 = scmp.ge.s32.totalorder %s35, 11
      %s42 = sphi 0, %s54
      %s43 = sphi 0, %s50
      %s44 = sphi 0, %s42
      %s45 = sphi 0, %s43
      %s46 = sphi 0, %s44
      %s47 = sphi 0, %s45
      %s75 = sphi 0, %s77
      %s78 = sphi 0, %s75
      %s79 = sphi 0, %s78
      %s95 = sphi 0, %s79
      %s99 = sphi 0, %s99
      %s101 = sphi 0, %s99
      %s102 = sphi 0, %s101
      %s116 = sphi 0, %s102
      %s122 = sphi 0, %s124
      %s125 = sphi 0, %s122
      %s126 = sphi 0, %s125
      %s142 = sphi 0, %s126
      %s148 = sphi 0, %s150
      %s151 = sphi 0, %s148
      %s152 = sphi 0, %s151
      %s168 = sphi 0, %s152
      %s172 = sphi 0, %s172
      %s174 = sphi 0, %s172
      %s175 = sphi 0, %s174
      %s189 = sphi 0, %s175
      %s193 = sphi 0, %s193
      %s195 = sphi 0, %s193
      %s196 = sphi 0, %s195
      %s210 = sphi 0, %s196
      %s214 = sphi 0, %s214
      %s216 = sphi 0, %s214
      %s217 = sphi 0, %s216
      %s231 = sphi 0, %s217
      %s237 = sphi 0, %s239
      %s240 = sphi 0, %s237
      %s241 = sphi 0, %s240
      %s257 = sphi 0, %s241
    $region4: #{tpu_custom_call.1} parent=1 // loop_header_branch
      %38 = sbr.rel (%p36) target = $region8
    $region5: #{tpu_custom_call.1} parent=1 // loop_body
      %s40 = ssub.s32 %s35, 1
      %s41 = ssub.s32 %s35, 2
      %s48 = sadd.s32 1, %s43
      %p49 = scmp.ge.s32.totalorder %s48, 3
      %s50 = scalar_select %p49, 0, %s48
      %s51 = sadd.s32 1, %s42
      %s52 = scalar_select %p49, %s51, %s42
      %p53 = scmp.ge.s32.totalorder %s52, 3
      %s54 = scalar_select %p53, 0, %s52
      %s55 = sshra.s32 %s43, 7
      %s56 = sand.u32 %s43, 127
      %s57 = sadd.s32 %s55, %s42
      %s58 = smul.u32 %s57, 128
      %s59 = sshra.s32 %s43, 7
      %s60 = sand.u32 %s43, 127
      %s61 = sadd.s32 %s58, %s60
      %s62 = sld [smem:[#allocation5 + %s61]]
      %s63 = sshra.s32 %s50, 7
      %s64 = sand.u32 %s50, 127
      %s65 = sadd.s32 %s63, %s54
      %s66 = smul.u32 %s65, 128
      %s67 = sshra.s32 %s50, 7
      %s68 = sand.u32 %s50, 127
      %s69 = sadd.s32 %s66, %s68
      %s70 = sld [smem:[#allocation5 + %s69]]
      %s71 = ssub.s32 %s42, %s54
      %s72 = ssub.s32 %s62, %s70
      %s73 = sor.u32 %s71, %s72
      %p74 = scmp.eq.s32.totalorder %s73, 0
      %s76 = sadd.s32 %s75, 1
      %s77 = scalar_select %p74, %s75, %s76
      %p80 = pneg %p74
      %p81 = scmp.eq.s32.totalorder %s35, 8
      %p82 = por %p80, %p81
      %p83 = scmp.ne.s32.totalorder %s75, %s78
      %p84 = scmp.eq.s32.totalorder %s35, 0
      %p85 = por %p83, %p84
      %p86 = scmp.ne.s32.totalorder %s75, %s78
      %p87 = scmp.eq.s32.totalorder %s40, 8
      %p88 = por %p86, %p87
      %p89 = scmp.ne.s32.totalorder %s78, %s79
      %p90 = scmp.eq.s32.totalorder %s40, 0
      %p91 = por %p89, %p90
      %p92 = scmp.ne.s32.totalorder %s78, %s79
      %p93 = scmp.eq.s32.totalorder %s41, 8
      %p94 = por %p92, %p93
      %p96 = scmp.ne.s32.totalorder %s79, %s95
      %p97 = scmp.eq.s32.totalorder %s41, 0
      %p98 = por %p96, %p97
      %s100 = sadd.s32 %s99, 1
      %p103 = scmp.eq.s32.totalorder %s35, 8
      %p104 = scmp.ne.s32.totalorder %s99, %s101
      %p105 = scmp.eq.s32.totalorder %s35, 0
      %p106 = por %p104, %p105
      %p107 = scmp.ne.s32.totalorder %s99, %s101
      %p108 = scmp.eq.s32.totalorder %s40, 8
      %p109 = por %p107, %p108
      %p110 = scmp.ne.s32.totalorder %s101, %s102
      %p111 = scmp.eq.s32.totalorder %s40, 0
      %p112 = por %p110, %p111
      %p113 = scmp.ne.s32.totalorder %s101, %s102
      %p114 = scmp.eq.s32.totalorder %s41, 8
      %p115 = por %p113, %p114
      %p117 = scmp.ne.s32.totalorder %s102, %s116
      %p118 = scmp.eq.s32.totalorder %s41, 0
      %p119 = por %p117, %p118
      %s120 = ssub.s32 %s42, %s54
      %p121 = scmp.eq.s32.totalorder %s120, 0
      %s123 = sadd.s32 %s122, 1
      %s124 = scalar_select %p121, %s122, %s123
      %p127 = pneg %p121
      %p128 = scmp.eq.s32.totalorder %s35, 8
      %p129 = por %p127, %p128
      %p130 = scmp.ne.s32.totalorder %s122, %s125
      %p131 = scmp.eq.s32.totalorder %s35, 0
      %p132 = por %p130, %p131
      %p133 = scmp.ne.s32.totalorder %s122, %s125
      %p134 = scmp.eq.s32.totalorder %s40, 8
      %p135 = por %p133, %p134
      %p136 = scmp.ne.s32.totalorder %s125, %s126
      %p137 = scmp.eq.s32.totalorder %s40, 0
      %p138 = por %p136, %p137
      %p139 = scmp.ne.s32.totalorder %s125, %s126
      %p140 = scmp.eq.s32.totalorder %s41, 8
      %p141 = por %p139, %p140
      %p143 = scmp.ne.s32.totalorder %s126, %s142
      %p144 = scmp.eq.s32.totalorder %s41, 0
      %p145 = por %p143, %p144
      %s146 = ssub.s32 %s42, %s54
      %p147 = scmp.eq.s32.totalorder %s146, 0
      %s149 = sadd.s32 %s148, 1
      %s150 = scalar_select %p147, %s148, %s149
      %p153 = pneg %p147
      %p154 = scmp.eq.s32.totalorder %s35, 8
      %p155 = por %p153, %p154
      %p156 = scmp.ne.s32.totalorder %s148, %s151
      %p157 = scmp.eq.s32.totalorder %s35, 0
      %p158 = por %p156, %p157
      %p159 = scmp.ne.s32.totalorder %s148, %s151
      %p160 = scmp.eq.s32.totalorder %s40, 8
      %p161 = por %p159, %p160
      %p162 = scmp.ne.s32.totalorder %s151, %s152
      %p163 = scmp.eq.s32.totalorder %s40, 0
      %p164 = por %p162, %p163
      %p165 = scmp.ne.s32.totalorder %s151, %s152
      %p166 = scmp.eq.s32.totalorder %s41, 8
      %p167 = por %p165, %p166
      %p169 = scmp.ne.s32.totalorder %s152, %s168
      %p170 = scmp.eq.s32.totalorder %s41, 0
      %p171 = por %p169, %p170
      %s173 = sadd.s32 %s172, 1
      %p176 = scmp.eq.s32.totalorder %s35, 8
      %p177 = scmp.ne.s32.totalorder %s172, %s174
      %p178 = scmp.eq.s32.totalorder %s35, 0
      %p179 = por %p177, %p178
      %p180 = scmp.ne.s32.totalorder %s172, %s174
      %p181 = scmp.eq.s32.totalorder %s40, 8
      %p182 = por %p180, %p181
      %p183 = scmp.ne.s32.totalorder %s174, %s175
      %p184 = scmp.eq.s32.totalorder %s40, 0
      %p185 = por %p183, %p184
      %p186 = scmp.ne.s32.totalorder %s174, %s175
      %p187 = scmp.eq.s32.totalorder %s41, 8
      %p188 = por %p186, %p187
      %p190 = scmp.ne.s32.totalorder %s175, %s189
      %p191 = scmp.eq.s32.totalorder %s41, 0
      %p192 = por %p190, %p191
      %s194 = sadd.s32 %s193, 1
      %p197 = scmp.eq.s32.totalorder %s35, 8
      %p198 = scmp.ne.s32.totalorder %s193, %s195
      %p199 = scmp.eq.s32.totalorder %s35, 0
      %p200 = por %p198, %p199
      %p201 = scmp.ne.s32.totalorder %s193, %s195
      %p202 = scmp.eq.s32.totalorder %s40, 8
      %p203 = por %p201, %p202
      %p204 = scmp.ne.s32.totalorder %s195, %s196
      %p205 = scmp.eq.s32.totalorder %s40, 0
      %p206 = por %p204, %p205
      %p207 = scmp.ne.s32.totalorder %s195, %s196
      %p208 = scmp.eq.s32.totalorder %s41, 8
      %p209 = por %p207, %p208
      %p211 = scmp.ne.s32.totalorder %s196, %s210
      %p212 = scmp.eq.s32.totalorder %s41, 0
      %p213 = por %p211, %p212
      %s215 = sadd.s32 %s214, 1
      %p218 = scmp.eq.s32.totalorder %s35, 8
      %p219 = scmp.ne.s32.totalorder %s214, %s216
      %p220 = scmp.eq.s32.totalorder %s35, 0
      %p221 = por %p219, %p220
      %p222 = scmp.ne.s32.totalorder %s214, %s216
      %p223 = scmp.eq.s32.totalorder %s40, 8
      %p224 = por %p222, %p223
      %p225 = scmp.ne.s32.totalorder %s216, %s217
      %p226 = scmp.eq.s32.totalorder %s40, 0
      %p227 = por %p225, %p226
      %p228 = scmp.ne.s32.totalorder %s216, %s217
      %p229 = scmp.eq.s32.totalorder %s41, 8
      %p230 = por %p228, %p229
      %p232 = scmp.ne.s32.totalorder %s217, %s231
      %p233 = scmp.eq.s32.totalorder %s41, 0
      %p234 = por %p232, %p233
      %s235 = ssub.s32 %s42, %s54
      %p236 = scmp.eq.s32.totalorder %s235, 0
      %s238 = sadd.s32 %s237, 1
      %s239 = scalar_select %p236, %s237, %s238
      %p242 = pneg %p236
      %p243 = scmp.eq.s32.totalorder %s35, 8
      %p244 = por %p242, %p243
      %p245 = scmp.ne.s32.totalorder %s237, %s240
      %p246 = scmp.eq.s32.totalorder %s35, 0
      %p247 = por %p245, %p246
      %p248 = scmp.ne.s32.totalorder %s237, %s240
      %p249 = scmp.eq.s32.totalorder %s40, 8
      %p250 = por %p248, %p249
      %p251 = scmp.ne.s32.totalorder %s240, %s241
      %p252 = scmp.eq.s32.totalorder %s40, 0
      %p253 = por %p251, %p252
      %p254 = scmp.ne.s32.totalorder %s240, %s241
      %p255 = scmp.eq.s32.totalorder %s41, 8
      %p256 = por %p254, %p255
      %p258 = scmp.ne.s32.totalorder %s241, %s257
      %p259 = scmp.eq.s32.totalorder %s41, 0
      %p260 = por %p258, %p259
      %p261 = scmp.le.s32.totalorder 1, %s35
      %p262 = scmp.lt.s32.totalorder %s35, 10
      %p263 = pnand %p261, %p262
      %p264 = pneg %p263
      // Predicated region
      $region9: #{tpu_custom_call.1} parent=5 // pred_check
        _
      $region10: #{tpu_custom_call.1} parent=5 // pred_check_branch
        %266 = sbr.rel (%p263) target = $region12
      $region11: #{tpu_custom_call.1} parent=5 // pred_region
        %s267 = ssub.s32 %s35, 1
        // Predicated region
        $region13: #{tpu_custom_call.1} parent=11 // pred_check
          %p268 = pneg %p112
        $region14: #{tpu_custom_call.1} parent=11 // pred_check_branch
          %270 = sbr.rel (%p268) target = $region16
        $region15: #{tpu_custom_call.1} parent=11 // pred_region
          _
        $region16: #{tpu_custom_call.1} parent=11 // pred_fallthru
          _
        // Predicated region
        $region17: #{tpu_custom_call.1} parent=11 // pred_check
          %p271 = pneg %p185
        $region18: #{tpu_custom_call.1} parent=11 // pred_check_branch
          %273 = sbr.rel (%p271) target = $region20
        $region19: #{tpu_custom_call.1} parent=11 // pred_region
          %275 = vsyncadd [#allocation11], 0
          %s276 = sshll.u32 %s6, 4
          %s277 = int_to_ptr.hbm [resolvable:$true] %s276
          %s278 = sshll.u32 [#allocation10], 4
          %s279 = int_to_ptr.vmem [resolvable:$true] %s278
          %284 = dma.hbm_to_vmem [thread:$0]  %s277, 1024, %s279, [#allocation11], 64, 64, 4
        $region20: #{tpu_custom_call.1} parent=11 // pred_fallthru
          _
        // Predicated region
        $region21: #{tpu_custom_call.1} parent=11 // pred_check
          %p285 = pneg %p206
        $region22: #{tpu_custom_call.1} parent=11 // pred_check_branch
          %287 = sbr.rel (%p285) target = $region24
        $region23: #{tpu_custom_call.1} parent=11 // pred_region
          %289 = vsyncadd [#allocation11], 0
          %s290 = sshll.u32 %s7, 4
          %s291 = int_to_ptr.hbm [resolvable:$true] %s290
          %s292 = sshll.u32 [#allocation12], 4
          %s293 = int_to_ptr.vmem [resolvable:$true] %s292
          %298 = dma.hbm_to_vmem [thread:$0]  %s291, 1024, %s293, [#allocation11], 64, 64, 4
        $region24: #{tpu_custom_call.1} parent=11 // pred_fallthru
          _
        // Predicated region
        $region25: #{tpu_custom_call.1} parent=11 // pred_check
          %p299 = pneg %p227
        $region26: #{tpu_custom_call.1} parent=11 // pred_check_branch
          %301 = sbr.rel (%p299) target = $region28
        $region27: #{tpu_custom_call.1} parent=11 // pred_region
          _
        $region28: #{tpu_custom_call.1} parent=11 // pred_fallthru
          _
      $region12: #{tpu_custom_call.1} parent=5 // pred_fallthru
        _
      %p302 = scmp.lt.s32.totalorder %s35, 9
      // Predicated region
      $region29: #{tpu_custom_call.1} parent=5 // pred_check
        %p303 = pneg %p302
      $region30: #{tpu_custom_call.1} parent=5 // pred_check_branch
        %305 = sbr.rel (%p303) target = $region32
      $region31: #{tpu_custom_call.1} parent=5 // pred_region
        // Predicated region
        $region33: #{tpu_custom_call.1} parent=31 // pred_check
          %p306 = pneg %p85
        $region34: #{tpu_custom_call.1} parent=31 // pred_check_branch
          %308 = sbr.rel (%p306) target = $region36
        $region35: #{tpu_custom_call.1} parent=31 // pred_region
          %s309 = sand.u32 %s75, 1
          %s310 = scalar_lea.sflag [#allocation8], %s309
          %s311 = sand.u32 %s75, 1
          %s312 = smul.addr %s311, 128
          %s313 = scalar_lea.vmem [#allocation7], %s312
          %s314 = sshra.s32 %s43, 7
          %s315 = sand.u32 %s43, 127
          %s316 = sadd.s32 %s314, %s42
          %s317 = smul.u32 %s316, 128
          %s318 = sshra.s32 %s43, 7
          %s319 = sand.u32 %s43, 127
          %s320 = sadd.s32 %s317, %s319
          %s321 = sld [smem:[#allocation5 + %s320]]
          %s322 = smul.u32 8, %s42
          %s323 = smul.u32 2, %s321
          %325 = vsyncadd %s310, 0
          %s326 = smul.addr %s322, 6
          %s327 = sadd.s32 %s323, %s326
          %s328 = smul.addr %s327, 8
          %s329 = scalar_lea.hbm %s2, %s328
          %s330 = sshll.u32 %s329, 4
          %s331 = int_to_ptr.hbm [resolvable:$true] %s330
          %s332 = sshll.u32 %s313, 4
          %s333 = int_to_ptr.vmem [resolvable:$true] %s332
          %338 = dma.hbm_to_vmem [thread:$0]  %s331, 2048, %s333, %s310, 768, 256, 16
        $region36: #{tpu_custom_call.1} parent=31 // pred_fallthru
          _
        // Predicated region
        $region37: #{tpu_custom_call.1} parent=31 // pred_check
          %p339 = pneg %p132
        $region38: #{tpu_custom_call.1} parent=31 // pred_check_branch
          %341 = sbr.rel (%p339) target = $region40
        $region39: #{tpu_custom_call.1} parent=31 // pred_region
          %s342 = smul.u32 32, %s42
          %p343 = scmp.lt.s32.totalorder %s342, 95
          %s344 = scalar_select %p343, %s342, 95
          %s345 = smul.addr %s344, 4
          %s346 = scalar_lea.vmem %s4, %s345
          %s347 = smul.u32 32, %s42
        $region40: #{tpu_custom_call.1} parent=31 // pred_fallthru
          _
        // Predicated region
        $region41: #{tpu_custom_call.1} parent=31 // pred_check
          %p348 = pneg %p158
        $region42: #{tpu_custom_call.1} parent=31 // pred_check_branch
          %350 = sbr.rel (%p348) target = $region44
        $region43: #{tpu_custom_call.1} parent=31 // pred_region
          %s351 = smul.u32 32, %s42
          %p352 = scmp.lt.s32.totalorder %s351, 95
          %s353 = scalar_select %p352, %s351, 95
          %s354 = smul.addr %s353, 8
          %s355 = scalar_lea.vmem %s5, %s354
          %s356 = smul.u32 32, %s42
        $region44: #{tpu_custom_call.1} parent=31 // pred_fallthru
          _
      $region32: #{tpu_custom_call.1} parent=5 // pred_fallthru
        _
      %p357 = scmp.le.s32.totalorder 1, %s35
      %p358 = scmp.lt.s32.totalorder %s35, 10
      %p359 = pnand %p357, %p358
      %p360 = pneg %p359
      // Predicated region
      $region45: #{tpu_custom_call.1} parent=5 // pred_check
        _
      $region46: #{tpu_custom_call.1} parent=5 // pred_check_branch
        %362 = sbr.rel (%p359) target = $region48
      $region47: #{tpu_custom_call.1} parent=5 // pred_region
        %s363 = ssub.s32 %s35, 1
        %s364 = sand.u32 %s78, 1
        %s365 = scalar_lea.sflag [#allocation8], %s364
        %s366 = sand.u32 %s78, 1
        %s367 = smul.addr %s366, 128
        %s368 = scalar_lea.vmem [#allocation7], %s367
        // Predicated region
        $region49: #{tpu_custom_call.1} parent=47 // pred_check
          %p369 = pneg %p91
        $region50: #{tpu_custom_call.1} parent=47 // pred_check_branch
          %371 = sbr.rel (%p369) target = $region52
        $region51: #{tpu_custom_call.1} parent=47 // pred_region
          %373 = dma.done %s365, 2048
        $region52: #{tpu_custom_call.1} parent=47 // pred_fallthru
          _
        // Predicated region
        $region53: #{tpu_custom_call.1} parent=47 // pred_check
          %p374 = pneg %p185
        $region54: #{tpu_custom_call.1} parent=47 // pred_check_branch
          %376 = sbr.rel (%p374) target = $region56
        $region55: #{tpu_custom_call.1} parent=47 // pred_region
          %378 = dma.done [#allocation11], 1024
        $region56: #{tpu_custom_call.1} parent=47 // pred_fallthru
          _
        // Predicated region
        $region57: #{tpu_custom_call.1} parent=47 // pred_check
          %p379 = pneg %p206
        $region58: #{tpu_custom_call.1} parent=47 // pred_check_branch
          %381 = sbr.rel (%p379) target = $region60
        $region59: #{tpu_custom_call.1} parent=47 // pred_region
          %383 = dma.done [#allocation11], 1024
        $region60: #{tpu_custom_call.1} parent=47 // pred_fallthru
          _
        %s384 = sand.u32 %s78, 1
        %s385 = scalar_lea.sflag [#allocation8], %s384
        %s386 = sand.u32 %s78, 1
        %s387 = smul.addr %s386, 128
        %s388 = scalar_lea.vmem [#allocation7], %s387
        %p389 = pneg %p91
        %p390 = pneg %p88
        %p391 = pneg %p112
        %p392 = pneg %p109
        %s393 = smul.u32 32, %s44
        %p394 = scmp.lt.s32.totalorder %s393, 95
        %s395 = scalar_select %p394, %s393, 95
        %s396 = smul.addr %s395, 4
        %s397 = scalar_lea.vmem %s4, %s396
        %p398 = pneg %p138
        %p399 = pneg %p135
        %s400 = smul.u32 32, %s44
        %p401 = scmp.lt.s32.totalorder %s400, 95
        %s402 = scalar_select %p401, %s400, 95
        %s403 = smul.addr %s402, 8
        %s404 = scalar_lea.vmem %s5, %s403
        %p405 = pneg %p164
        %p406 = pneg %p161
        %p407 = pneg %p185
        %p408 = pneg %p182
        %p409 = pneg %p206
        %p410 = pneg %p203
        %p411 = pneg %p227
        %p412 = pneg %p224
        %p413 = pneg %p253
        %p414 = pneg %p250
        %s415 = sand.u32 %s240, 1
        %s416 = scalar_lea.sflag [#allocation9], %s415
        %s417 = sand.u32 %s240, 1
        %s418 = smul.addr %s417, 128
        %s419 = scalar_lea.vmem [#allocation13], %s418
        %s420 = sshra.s32 %s45, 7
        %s421 = sand.u32 %s45, 127
        %s422 = sadd.s32 %s420, %s44
        %s423 = smul.u32 %s422, 128
        %s424 = sshra.s32 %s45, 7
        %s425 = sand.u32 %s45, 127
        %s426 = sadd.s32 %s423, %s425
        %s427 = sld [smem:[#allocation5 + %s426]]
        %s428 = smul.u32 8, %s44
        %s429 = smul.u32 2, %s427
        %s430 = smul.u32 32, %s44
        %p431 = scmp.lt.s32.totalorder %s430, 95
        %s432 = scalar_select %p431, %s430, 95
        %s433 = smul.addr %s432, 4
        %s434 = scalar_lea.vmem %s4, %s433
        %s435 = smul.u32 32, %s44
        %s436 = smul.u32 32, %s44
        %p437 = scmp.lt.s32.totalorder %s436, 95
        %s438 = scalar_select %p437, %s436, 95
        %s439 = smul.addr %s438, 8
        %s440 = scalar_lea.vmem %s5, %s439
        %s441 = smul.u32 32, %s44
        %s442 = smul.u32 32, %s44
        %p443 = scmp.eq.s32.totalorder %s45, 0
        // Predicated region
        $region61: #{tpu_custom_call.1} parent=47 // pred_check
          %p444 = pneg %p443
        $region62: #{tpu_custom_call.1} parent=47 // pred_check_branch
          %446 = sbr.rel (%p444) target = $region64
        $region63: #{tpu_custom_call.1} parent=47 // pred_region
          %447 = vst [vmem:[#allocation2] sm:$0xff] 0.0
          %448 = vst [vmem:[#allocation2 + $0x8] sm:$0xff] 0.0
          %449 = vst [vmem:[#allocation2 + $0x10] sm:$0xff] 0.0
          %450 = vst [vmem:[#allocation2 + $0x18] sm:$0xff] 0.0
          %451 = vst [vmem:[#allocation2 + $0x20] sm:$0xff] 0.0
          %452 = vst [vmem:[#allocation2 + $0x28] sm:$0xff] 0.0
          %453 = vst [vmem:[#allocation2 + $0x30] sm:$0xff] 0.0
          %454 = vst [vmem:[#allocation2 + $0x38] sm:$0xff] 0.0
          %455 = vst [vmem:[#allocation2 + $0x40] sm:$0xff] 0.0
          %456 = vst [vmem:[#allocation2 + $0x48] sm:$0xff] 0.0
          %457 = vst [vmem:[#allocation2 + $0x50] sm:$0xff] 0.0
          %458 = vst [vmem:[#allocation2 + $0x58] sm:$0xff] 0.0
          %459 = vst [vmem:[#allocation2 + $0x60] sm:$0xff] 0.0
          %460 = vst [vmem:[#allocation2 + $0x68] sm:$0xff] 0.0
          %461 = vst [vmem:[#allocation2 + $0x70] sm:$0xff] 0.0
          %462 = vst [vmem:[#allocation2 + $0x78] sm:$0xff] 0.0
          %463 = vst [vmem:[#allocation2 + $0x80] sm:$0xff] 0.0
          %464 = vst [vmem:[#allocation2 + $0x88] sm:$0xff] 0.0
          %465 = vst [vmem:[#allocation2 + $0x90] sm:$0xff] 0.0
          %466 = vst [vmem:[#allocation2 + $0x98] sm:$0xff] 0.0
          %467 = vst [vmem:[#allocation2 + $0xa0] sm:$0xff] 0.0
          %468 = vst [vmem:[#allocation2 + $0xa8] sm:$0xff] 0.0
          %469 = vst [vmem:[#allocation2 + $0xb0] sm:$0xff] 0.0
          %470 = vst [vmem:[#allocation2 + $0xb8] sm:$0xff] 0.0
          %471 = vst [vmem:[#allocation2 + $0xc0] sm:$0xff] 0.0
          %472 = vst [vmem:[#allocation2 + $0xc8] sm:$0xff] 0.0
          %473 = vst [vmem:[#allocation2 + $0xd0] sm:$0xff] 0.0
          %474 = vst [vmem:[#allocation2 + $0xd8] sm:$0xff] 0.0
          %475 = vst [vmem:[#allocation2 + $0xe0] sm:$0xff] 0.0
          %476 = vst [vmem:[#allocation2 + $0xe8] sm:$0xff] 0.0
          %477 = vst [vmem:[#allocation2 + $0xf0] sm:$0xff] 0.0
          %478 = vst [vmem:[#allocation2 + $0xf8] sm:$0xff] 0.0
          %v479 = vld [vmem:[%s434] sm:$0xf]
          %v480 = vld [vmem:[%s434 + $0x4] sm:$0xf]
          %v481 = vld [vmem:[%s434 + $0x8] sm:$0xf]
          %v482 = vld [vmem:[%s434 + $0xc] sm:$0xf]
          %v483 = vld [vmem:[%s434 + $0x10] sm:$0xf]
          %v484 = vld [vmem:[%s434 + $0x14] sm:$0xf]
          %v485 = vld [vmem:[%s434 + $0x18] sm:$0xf]
          %v486 = vld [vmem:[%s434 + $0x1c] sm:$0xf]
          %v487 = vld [vmem:[%s434 + $0x20] sm:$0xf]
          %v488 = vld [vmem:[%s434 + $0x24] sm:$0xf]
          %v489 = vld [vmem:[%s434 + $0x28] sm:$0xf]
          %v490 = vld [vmem:[%s434 + $0x2c] sm:$0xf]
          %v491 = vld [vmem:[%s434 + $0x30] sm:$0xf]
          %v492 = vld [vmem:[%s434 + $0x34] sm:$0xf]
          %v493 = vld [vmem:[%s434 + $0x38] sm:$0xf]
          %v494 = vld [vmem:[%s434 + $0x3c] sm:$0xf]
          %v495 = vld [vmem:[%s434 + $0x40] sm:$0xf]
          %v496 = vld [vmem:[%s434 + $0x44] sm:$0xf]
          %v497 = vld [vmem:[%s434 + $0x48] sm:$0xf]
          %v498 = vld [vmem:[%s434 + $0x4c] sm:$0xf]
          %v499 = vld [vmem:[%s434 + $0x50] sm:$0xf]
          %v500 = vld [vmem:[%s434 + $0x54] sm:$0xf]
          %v501 = vld [vmem:[%s434 + $0x58] sm:$0xf]
          %v502 = vld [vmem:[%s434 + $0x5c] sm:$0xf]
          %v503 = vld [vmem:[%s434 + $0x60] sm:$0xf]
          %v504 = vld [vmem:[%s434 + $0x64] sm:$0xf]
          %v505 = vld [vmem:[%s434 + $0x68] sm:$0xf]
          %v506 = vld [vmem:[%s434 + $0x6c] sm:$0xf]
          %v507 = vld [vmem:[%s434 + $0x70] sm:$0xf]
          %v508 = vld [vmem:[%s434 + $0x74] sm:$0xf]
          %v509 = vld [vmem:[%s434 + $0x78] sm:$0xf]
          %v510 = vld [vmem:[%s434 + $0x7c] sm:$0xf]
          %v511 = vld [vmem:[#allocation12] sm:$0xf]
          %v512 = vld [vmem:[#allocation12 + $0x4] sm:$0xf]
          %v513 = vld [vmem:[#allocation12 + $0x8] sm:$0xf]
          %v514 = vld [vmem:[#allocation12 + $0xc] sm:$0xf]
          %v515 = vld [vmem:[#allocation12 + $0x10] sm:$0xf]
          %v516 = vld [vmem:[#allocation12 + $0x14] sm:$0xf]
          %v517 = vld [vmem:[#allocation12 + $0x18] sm:$0xf]
          %v518 = vld [vmem:[#allocation12 + $0x1c] sm:$0xf]
          %v519 = vld [vmem:[#allocation12 + $0x20] sm:$0xf]
          %v520 = vld [vmem:[#allocation12 + $0x24] sm:$0xf]
          %v521 = vld [vmem:[#allocation12 + $0x28] sm:$0xf]
          %v522 = vld [vmem:[#allocation12 + $0x2c] sm:$0xf]
          %v523 = vld [vmem:[#allocation12 + $0x30] sm:$0xf]
          %v524 = vld [vmem:[#allocation12 + $0x34] sm:$0xf]
          %v525 = vld [vmem:[#allocation12 + $0x38] sm:$0xf]
          %v526 = vld [vmem:[#allocation12 + $0x3c] sm:$0xf]
          %v527 = vld [vmem:[%s8] sm:$0x1]
          %v529 = vperm.slane %v527, 0
          %v563 = vunpack.c.l.b16 %v479
          %v564 = vunpack.c.l.b16 %v480
          %v565 = vunpack.c.l.b16 %v481
          %v566 = vunpack.c.l.b16 %v482
          %v567 = vunpack.c.l.b16 %v483
          %v568 = vunpack.c.l.b16 %v484
          %v569 = vunpack.c.l.b16 %v485
          %v570 = vunpack.c.l.b16 %v486
          %v571 = vunpack.c.l.b16 %v487
          %v572 = vunpack.c.l.b16 %v488
          %v573 = vunpack.c.l.b16 %v489
          %v574 = vunpack.c.l.b16 %v490
          %v575 = vunpack.c.l.b16 %v491
          %v576 = vunpack.c.l.b16 %v492
          %v577 = vunpack.c.l.b16 %v493
          %v578 = vunpack.c.l.b16 %v494
          %v579 = vunpack.c.l.b16 %v495
          %v580 = vunpack.c.l.b16 %v496
          %v581 = vunpack.c.l.b16 %v497
          %v582 = vunpack.c.l.b16 %v498
          %v583 = vunpack.c.l.b16 %v499
          %v584 = vunpack.c.l.b16 %v500
          %v585 = vunpack.c.l.b16 %v501
          %v586 = vunpack.c.l.b16 %v502
          %v587 = vunpack.c.l.b16 %v503
          %v588 = vunpack.c.l.b16 %v504
          %v589 = vunpack.c.l.b16 %v505
          %v590 = vunpack.c.l.b16 %v506
          %v591 = vunpack.c.l.b16 %v507
          %v592 = vunpack.c.l.b16 %v508
          %v593 = vunpack.c.l.b16 %v509
          %v594 = vunpack.c.l.b16 %v510
          %v595 = vpack.c.b16 %v564, %v563
          %v596 = vpack.c.b16 %v566, %v565
          %v597 = vpack.c.b16 %v568, %v567
          %v598 = vpack.c.b16 %v570, %v569
          %v599 = vpack.c.b16 %v572, %v571
          %v600 = vpack.c.b16 %v574, %v573
          %v601 = vpack.c.b16 %v576, %v575
          %v602 = vpack.c.b16 %v578, %v577
          %v603 = vpack.c.b16 %v580, %v579
          %v604 = vpack.c.b16 %v582, %v581
          %v605 = vpack.c.b16 %v584, %v583
          %v606 = vpack.c.b16 %v586, %v585
          %v607 = vpack.c.b16 %v588, %v587
          %v608 = vpack.c.b16 %v590, %v589
          %v609 = vpack.c.b16 %v592, %v591
          %v610 = vpack.c.b16 %v594, %v593
          %v643 = vunpack.c.l.b16 %v511
          %v644 = vunpack.c.l.b16 %v512
          %v645 = vunpack.c.l.b16 %v513
          %v646 = vunpack.c.l.b16 %v514
          %v647 = vunpack.c.l.b16 %v515
          %v648 = vunpack.c.l.b16 %v516
          %v649 = vunpack.c.l.b16 %v517
          %v650 = vunpack.c.l.b16 %v518
          %v651 = vunpack.c.l.b16 %v519
          %v652 = vunpack.c.l.b16 %v520
          %v653 = vunpack.c.l.b16 %v521
          %v654 = vunpack.c.l.b16 %v522
          %v655 = vunpack.c.l.b16 %v523
          %v656 = vunpack.c.l.b16 %v524
          %v657 = vunpack.c.l.b16 %v525
          %v658 = vunpack.c.l.b16 %v526
          %v659 = vpack.c.b16 %v644, %v643
          %v660 = vpack.c.b16 %v646, %v645
          %v661 = vpack.c.b16 %v648, %v647
          %v662 = vpack.c.b16 %v650, %v649
          %v663 = vpack.c.b16 %v652, %v651
          %v664 = vpack.c.b16 %v654, %v653
          %v665 = vpack.c.b16 %v656, %v655
          %v666 = vpack.c.b16 %v658, %v657
          %675 = vmatpush.bf16.msra.mxu0 %v666
          %676 = vmatpush.bf16.msra.mxu0 %v665
          %677 = vmatpush.bf16.msra.mxu0 %v664
          %678 = vmatpush.bf16.msra.mxu0 %v663
          %679 = vmatpush.bf16.msra.mxu0 %v662
          %680 = vmatpush.bf16.msra.mxu0 %v661
          %681 = vmatpush.bf16.msra.mxu0 %v660
          %682 = vmatpush.bf16.msra.mxu0 %v659
          %683 = vmatmul.bf16.gmra.mxu0 %v595
          %v684 = vpop.f32.mrf.mxu0
          %v685 = vadd.f32 %v529, %v684
          %v686 = vpop.f32.mrf.mxu0
          %v687 = vadd.f32 %v529, %v686
          %688 = vmatmul.bf16.gmra.mxu0 %v596
          %v689 = vpop.f32.mrf.mxu0
          %v690 = vadd.f32 %v529, %v689
          %v691 = vpop.f32.mrf.mxu0
          %v692 = vadd.f32 %v529, %v691
          %693 = vmatmul.bf16.gmra.mxu0 %v597
          %v694 = vpop.f32.mrf.mxu0
          %v695 = vadd.f32 %v529, %v694
          %v696 = vpop.f32.mrf.mxu0
          %v697 = vadd.f32 %v529, %v696
          %698 = vmatmul.bf16.gmra.mxu0 %v598
          %v699 = vpop.f32.mrf.mxu0
          %v700 = vadd.f32 %v529, %v699
          %v701 = vpop.f32.mrf.mxu0
          %v702 = vadd.f32 %v529, %v701
          %703 = vmatmul.bf16.gmra.mxu0 %v599
          %v704 = vpop.f32.mrf.mxu0
          %v705 = vadd.f32 %v529, %v704
          %v706 = vpop.f32.mrf.mxu0
          %v707 = vadd.f32 %v529, %v706
          %708 = vmatmul.bf16.gmra.mxu0 %v600
          %v709 = vpop.f32.mrf.mxu0
          %v710 = vadd.f32 %v529, %v709
          %v711 = vpop.f32.mrf.mxu0
          %v712 = vadd.f32 %v529, %v711
          %713 = vmatmul.bf16.gmra.mxu0 %v601
          %v714 = vpop.f32.mrf.mxu0
          %v715 = vadd.f32 %v529, %v714
          %v716 = vpop.f32.mrf.mxu0
          %v717 = vadd.f32 %v529, %v716
          %718 = vmatmul.bf16.gmra.mxu0 %v602
          %v719 = vpop.f32.mrf.mxu0
          %v720 = vadd.f32 %v529, %v719
          %v721 = vpop.f32.mrf.mxu0
          %v722 = vadd.f32 %v529, %v721
          %723 = vmatmul.bf16.gmra.mxu0 %v603
          %v724 = vpop.f32.mrf.mxu0
          %v725 = vadd.f32 %v529, %v724
          %v726 = vpop.f32.mrf.mxu0
          %v727 = vadd.f32 %v529, %v726
          %728 = vmatmul.bf16.gmra.mxu0 %v604
          %v729 = vpop.f32.mrf.mxu0
          %v730 = vadd.f32 %v529, %v729
          %v731 = vpop.f32.mrf.mxu0
          %v732 = vadd.f32 %v529, %v731
          %733 = vmatmul.bf16.gmra.mxu0 %v605
          %v734 = vpop.f32.mrf.mxu0
          %v735 = vadd.f32 %v529, %v734
          %v736 = vpop.f32.mrf.mxu0
          %v737 = vadd.f32 %v529, %v736
          %738 = vmatmul.bf16.gmra.mxu0 %v606
          %v739 = vpop.f32.mrf.mxu0
          %v740 = vadd.f32 %v529, %v739
          %v741 = vpop.f32.mrf.mxu0
          %v742 = vadd.f32 %v529, %v741
          %743 = vmatmul.bf16.gmra.mxu0 %v607
          %v744 = vpop.f32.mrf.mxu0
          %v745 = vadd.f32 %v529, %v744
          %v746 = vpop.f32.mrf.mxu0
          %v747 = vadd.f32 %v529, %v746
          %748 = vmatmul.bf16.gmra.mxu0 %v608
          %v749 = vpop.f32.mrf.mxu0
          %v750 = vadd.f32 %v529, %v749
          %v751 = vpop.f32.mrf.mxu0
          %v752 = vadd.f32 %v529, %v751
          %753 = vmatmul.bf16.gmra.mxu0 %v609
          %v754 = vpop.f32.mrf.mxu0
          %v755 = vadd.f32 %v529, %v754
          %v756 = vpop.f32.mrf.mxu0
          %v757 = vadd.f32 %v529, %v756
          %758 = vmatmul.bf16.gmra.mxu0 %v610
          %v759 = vpop.f32.mrf.mxu0
          %v760 = vadd.f32 %v529, %v759
          %v761 = vpop.f32.mrf.mxu0
          %v762 = vadd.f32 %v529, %v761
          %763 = vdwg.mxu0
          %764 = vst [vmem:[#allocation3] sm:$0xff] %v685
          %765 = vst [vmem:[#allocation3 + $0x8] sm:$0xff] %v687
          %766 = vst [vmem:[#allocation3 + $0x10] sm:$0xff] %v690
          %767 = vst [vmem:[#allocation3 + $0x18] sm:$0xff] %v692
          %768 = vst [vmem:[#allocation3 + $0x20] sm:$0xff] %v695
          %769 = vst [vmem:[#allocation3 + $0x28] sm:$0xff] %v697
          %770 = vst [vmem:[#allocation3 + $0x30] sm:$0xff] %v700
          %771 = vst [vmem:[#allocation3 + $0x38] sm:$0xff] %v702
          %772 = vst [vmem:[#allocation3 + $0x40] sm:$0xff] %v705
          %773 = vst [vmem:[#allocation3 + $0x48] sm:$0xff] %v707
          %774 = vst [vmem:[#allocation3 + $0x50] sm:$0xff] %v710
          %775 = vst [vmem:[#allocation3 + $0x58] sm:$0xff] %v712
          %776 = vst [vmem:[#allocation3 + $0x60] sm:$0xff] %v715
          %777 = vst [vmem:[#allocation3 + $0x68] sm:$0xff] %v717
          %778 = vst [vmem:[#allocation3 + $0x70] sm:$0xff] %v720
          %779 = vst [vmem:[#allocation3 + $0x78] sm:$0xff] %v722
          %780 = vst [vmem:[#allocation3 + $0x80] sm:$0xff] %v725
          %781 = vst [vmem:[#allocation3 + $0x88] sm:$0xff] %v727
          %782 = vst [vmem:[#allocation3 + $0x90] sm:$0xff] %v730
          %783 = vst [vmem:[#allocation3 + $0x98] sm:$0xff] %v732
          %784 = vst [vmem:[#allocation3 + $0xa0] sm:$0xff] %v735
          %785 = vst [vmem:[#allocation3 + $0xa8] sm:$0xff] %v737
          %786 = vst [vmem:[#allocation3 + $0xb0] sm:$0xff] %v740
          %787 = vst [vmem:[#allocation3 + $0xb8] sm:$0xff] %v742
          %788 = vst [vmem:[#allocation3 + $0xc0] sm:$0xff] %v745
          %789 = vst [vmem:[#allocation3 + $0xc8] sm:$0xff] %v747
          %790 = vst [vmem:[#allocation3 + $0xd0] sm:$0xff] %v750
          %791 = vst [vmem:[#allocation3 + $0xd8] sm:$0xff] %v752
          %792 = vst [vmem:[#allocation3 + $0xe0] sm:$0xff] %v755
          %793 = vst [vmem:[#allocation3 + $0xe8] sm:$0xff] %v757
          %794 = vst [vmem:[#allocation3 + $0xf0] sm:$0xff] %v760
          %795 = vst [vmem:[#allocation3 + $0xf8] sm:$0xff] %v762
        $region64: #{tpu_custom_call.1} parent=47 // pred_fallthru
          _
        %s796 = sld [smem:[#allocation6 + %s44]]
        %p797 = scmp.lt.s32.totalorder %s45, %s796
        // Predicated region
        $region65: #{tpu_custom_call.1} parent=47 // pred_check
          %p798 = pneg %p797
        $region66: #{tpu_custom_call.1} parent=47 // pred_check_branch
          %800 = sbr.rel (%p798) target = $region68
        $region67: #{tpu_custom_call.1} parent=47 // pred_region
          %v801 = vld [vmem:[%s368] sm:$0xff]
          %v802 = vld [vmem:[%s368 + $0x8] sm:$0xff]
          %v803 = vld [vmem:[%s368 + $0x10] sm:$0xff]
          %v804 = vld [vmem:[%s368 + $0x18] sm:$0xff]
          %v805 = vld [vmem:[%s368 + $0x20] sm:$0xff]
          %v806 = vld [vmem:[%s368 + $0x28] sm:$0xff]
          %v807 = vld [vmem:[%s368 + $0x30] sm:$0xff]
          %v808 = vld [vmem:[%s368 + $0x38] sm:$0xff]
          %v809 = vld [vmem:[%s368 + $0x40] sm:$0xff]
          %v810 = vld [vmem:[%s368 + $0x48] sm:$0xff]
          %v811 = vld [vmem:[%s368 + $0x50] sm:$0xff]
          %v812 = vld [vmem:[%s368 + $0x58] sm:$0xff]
          %v813 = vld [vmem:[%s368 + $0x60] sm:$0xff]
          %v814 = vld [vmem:[%s368 + $0x68] sm:$0xff]
          %v815 = vld [vmem:[%s368 + $0x70] sm:$0xff]
          %v816 = vld [vmem:[%s368 + $0x78] sm:$0xff]
          %v817 = vunpack.c.0.s8 %v801
          %v818 = vunpack.c.0.s8 %v802
          %v819 = vunpack.c.1.s8 %v801
          %v820 = vunpack.c.1.s8 %v802
          %v821 = vunpack.c.2.s8 %v801
          %v822 = vunpack.c.2.s8 %v802
          %v823 = vunpack.c.3.s8 %v801
          %v824 = vunpack.c.3.s8 %v802
          %v825 = vunpack.c.0.s8 %v803
          %v826 = vunpack.c.0.s8 %v804
          %v827 = vunpack.c.1.s8 %v803
          %v828 = vunpack.c.1.s8 %v804
          %v829 = vunpack.c.2.s8 %v803
          %v830 = vunpack.c.2.s8 %v804
          %v831 = vunpack.c.3.s8 %v803
          %v832 = vunpack.c.3.s8 %v804
          %v833 = vunpack.c.0.s8 %v805
          %v834 = vunpack.c.0.s8 %v806
          %v835 = vunpack.c.1.s8 %v805
          %v836 = vunpack.c.1.s8 %v806
          %v837 = vunpack.c.2.s8 %v805
          %v838 = vunpack.c.2.s8 %v806
          %v839 = vunpack.c.3.s8 %v805
          %v840 = vunpack.c.3.s8 %v806
          %v841 = vunpack.c.0.s8 %v807
          %v842 = vunpack.c.0.s8 %v808
          %v843 = vunpack.c.1.s8 %v807
          %v844 = vunpack.c.1.s8 %v808
          %v845 = vunpack.c.2.s8 %v807
          %v846 = vunpack.c.2.s8 %v808
          %v847 = vunpack.c.3.s8 %v807
          %v848 = vunpack.c.3.s8 %v808
          %v849 = vunpack.c.0.s8 %v809
          %v850 = vunpack.c.0.s8 %v810
          %v851 = vunpack.c.1.s8 %v809
          %v852 = vunpack.c.1.s8 %v810
          %v853 = vunpack.c.2.s8 %v809
          %v854 = vunpack.c.2.s8 %v810
          %v855 = vunpack.c.3.s8 %v809
          %v856 = vunpack.c.3.s8 %v810
          %v857 = vunpack.c.0.s8 %v811
          %v858 = vunpack.c.0.s8 %v812
          %v859 = vunpack.c.1.s8 %v811
          %v860 = vunpack.c.1.s8 %v812
          %v861 = vunpack.c.2.s8 %v811
          %v862 = vunpack.c.2.s8 %v812
          %v863 = vunpack.c.3.s8 %v811
          %v864 = vunpack.c.3.s8 %v812
          %v865 = vunpack.c.0.s8 %v813
          %v866 = vunpack.c.0.s8 %v814
          %v867 = vunpack.c.1.s8 %v813
          %v868 = vunpack.c.1.s8 %v814
          %v869 = vunpack.c.2.s8 %v813
          %v870 = vunpack.c.2.s8 %v814
          %v871 = vunpack.c.3.s8 %v813
          %v872 = vunpack.c.3.s8 %v814
          %v873 = vunpack.c.0.s8 %v815
          %v874 = vunpack.c.0.s8 %v816
          %v875 = vunpack.c.1.s8 %v815
          %v876 = vunpack.c.1.s8 %v816
          %v877 = vunpack.c.2.s8 %v815
          %v878 = vunpack.c.2.s8 %v816
          %v879 = vunpack.c.3.s8 %v815
          %v880 = vunpack.c.3.s8 %v816
          %v881 = vcvt.s32.f32 %v817
          %v882 = vcvt.s32.f32 %v818
          %v883 = vcvt.s32.f32 %v819
          %v884 = vcvt.s32.f32 %v820
          %v885 = vcvt.s32.f32 %v821
          %v886 = vcvt.s32.f32 %v822
          %v887 = vcvt.s32.f32 %v823
          %v888 = vcvt.s32.f32 %v824
          %v889 = vcvt.s32.f32 %v825
          %v890 = vcvt.s32.f32 %v826
          %v891 = vcvt.s32.f32 %v827
          %v892 = vcvt.s32.f32 %v828
          %v893 = vcvt.s32.f32 %v829
          %v894 = vcvt.s32.f32 %v830
          %v895 = vcvt.s32.f32 %v831
          %v896 = vcvt.s32.f32 %v832
          %v897 = vcvt.s32.f32 %v833
          %v898 = vcvt.s32.f32 %v834
          %v899 = vcvt.s32.f32 %v835
          %v900 = vcvt.s32.f32 %v836
          %v901 = vcvt.s32.f32 %v837
          %v902 = vcvt.s32.f32 %v838
          %v903 = vcvt.s32.f32 %v839
          %v904 = vcvt.s32.f32 %v840
          %v905 = vcvt.s32.f32 %v841
          %v906 = vcvt.s32.f32 %v842
          %v907 = vcvt.s32.f32 %v843
          %v908 = vcvt.s32.f32 %v844
          %v909 = vcvt.s32.f32 %v845
          %v910 = vcvt.s32.f32 %v846
          %v911 = vcvt.s32.f32 %v847
          %v912 = vcvt.s32.f32 %v848
          %v913 = vcvt.s32.f32 %v849
          %v914 = vcvt.s32.f32 %v850
          %v915 = vcvt.s32.f32 %v851
          %v916 = vcvt.s32.f32 %v852
          %v917 = vcvt.s32.f32 %v853
          %v918 = vcvt.s32.f32 %v854
          %v919 = vcvt.s32.f32 %v855
          %v920 = vcvt.s32.f32 %v856
          %v921 = vcvt.s32.f32 %v857
          %v922 = vcvt.s32.f32 %v858
          %v923 = vcvt.s32.f32 %v859
          %v924 = vcvt.s32.f32 %v860
          %v925 = vcvt.s32.f32 %v861
          %v926 = vcvt.s32.f32 %v862
          %v927 = vcvt.s32.f32 %v863
          %v928 = vcvt.s32.f32 %v864
          %v929 = vcvt.s32.f32 %v865
          %v930 = vcvt.s32.f32 %v866
          %v931 = vcvt.s32.f32 %v867
          %v932 = vcvt.s32.f32 %v868
          %v933 = vcvt.s32.f32 %v869
          %v934 = vcvt.s32.f32 %v870
          %v935 = vcvt.s32.f32 %v871
          %v936 = vcvt.s32.f32 %v872
          %v937 = vcvt.s32.f32 %v873
          %v938 = vcvt.s32.f32 %v874
          %v939 = vcvt.s32.f32 %v875
          %v940 = vcvt.s32.f32 %v876
          %v941 = vcvt.s32.f32 %v877
          %v942 = vcvt.s32.f32 %v878
          %v943 = vcvt.s32.f32 %v879
          %v944 = vcvt.s32.f32 %v880
          %v945 = vpack.c.bf16 %v883, %v881
          %v946 = vpack.c.bf16 %v884, %v882
          %v947 = vpack.c.bf16 %v887, %v885
          %v948 = vpack.c.bf16 %v888, %v886
          %v949 = vpack.c.bf16 %v891, %v889
          %v950 = vpack.c.bf16 %v892, %v890
          %v951 = vpack.c.bf16 %v895, %v893
          %v952 = vpack.c.bf16 %v896, %v894
          %v953 = vpack.c.bf16 %v899, %v897
          %v954 = vpack.c.bf16 %v900, %v898
          %v955 = vpack.c.bf16 %v903, %v901
          %v956 = vpack.c.bf16 %v904, %v902
          %v957 = vpack.c.bf16 %v907, %v905
          %v958 = vpack.c.bf16 %v908, %v906
          %v959 = vpack.c.bf16 %v911, %v909
          %v960 = vpack.c.bf16 %v912, %v910
          %v961 = vpack.c.bf16 %v915, %v913
          %v962 = vpack.c.bf16 %v916, %v914
          %v963 = vpack.c.bf16 %v919, %v917
          %v964 = vpack.c.bf16 %v920, %v918
          %v965 = vpack.c.bf16 %v923, %v921
          %v966 = vpack.c.bf16 %v924, %v922
          %v967 = vpack.c.bf16 %v927, %v925
          %v968 = vpack.c.bf16 %v928, %v926
          %v969 = vpack.c.bf16 %v931, %v929
          %v970 = vpack.c.bf16 %v932, %v930
          %v971 = vpack.c.bf16 %v935, %v933
          %v972 = vpack.c.bf16 %v936, %v934
          %v973 = vpack.c.bf16 %v939, %v937
          %v974 = vpack.c.bf16 %v940, %v938
          %v975 = vpack.c.bf16 %v943, %v941
          %v976 = vpack.c.bf16 %v944, %v942
          %s977 = sshra.s32 %s45, 7
          %s978 = sand.u32 %s45, 127
          %s979 = sadd.s32 %s977, %s44
          %s980 = smul.u32 %s979, 128
          %s981 = sshra.s32 %s45, 7
          %s982 = sand.u32 %s45, 127
          %s983 = sadd.s32 %s980, %s982
          %s984 = sld [smem:[#allocation5 + %s983]]
          %s985 = smul.u32 %s984, 256
          %s986 = sshra.s32 %s985, 3
          %s987 = sand.u32 %s985, 7
          %s988 = smul.addr %s986, 4
          %s989 = scalar_lea.vmem %s3, %s988
          %v990 = vld [vmem:[%s989] sm:$0xf]
          %v991 = vld [vmem:[%s989 + $0x4] sm:$0xf]
          %v992 = vld [vmem:[%s989 + $0x8] sm:$0xf]
          %v993 = vld [vmem:[%s989 + $0xc] sm:$0xf]
          %v994 = vld [vmem:[%s989 + $0x10] sm:$0xf]
          %v995 = vld [vmem:[%s989 + $0x14] sm:$0xf]
          %v996 = vld [vmem:[%s989 + $0x18] sm:$0xf]
          %v997 = vld [vmem:[%s989 + $0x1c] sm:$0xf]
          %v998 = vld [vmem:[%s989 + $0x20] sm:$0xf]
          %v999 = vld [vmem:[%s989 + $0x24] sm:$0xf]
          %v1000 = vld [vmem:[%s989 + $0x28] sm:$0xf]
          %v1001 = vld [vmem:[%s989 + $0x2c] sm:$0xf]
          %v1002 = vld [vmem:[%s989 + $0x30] sm:$0xf]
          %v1003 = vld [vmem:[%s989 + $0x34] sm:$0xf]
          %v1004 = vld [vmem:[%s989 + $0x38] sm:$0xf]
          %v1005 = vld [vmem:[%s989 + $0x3c] sm:$0xf]
          %v1006 = vld [vmem:[%s989 + $0x40] sm:$0xf]
          %v1007 = vld [vmem:[%s989 + $0x44] sm:$0xf]
          %v1008 = vld [vmem:[%s989 + $0x48] sm:$0xf]
          %v1009 = vld [vmem:[%s989 + $0x4c] sm:$0xf]
          %v1010 = vld [vmem:[%s989 + $0x50] sm:$0xf]
          %v1011 = vld [vmem:[%s989 + $0x54] sm:$0xf]
          %v1012 = vld [vmem:[%s989 + $0x58] sm:$0xf]
          %v1013 = vld [vmem:[%s989 + $0x5c] sm:$0xf]
          %v1014 = vld [vmem:[%s989 + $0x60] sm:$0xf]
          %v1015 = vld [vmem:[%s989 + $0x64] sm:$0xf]
          %v1016 = vld [vmem:[%s989 + $0x68] sm:$0xf]
          %v1017 = vld [vmem:[%s989 + $0x6c] sm:$0xf]
          %v1018 = vld [vmem:[%s989 + $0x70] sm:$0xf]
          %v1019 = vld [vmem:[%s989 + $0x74] sm:$0xf]
          %v1020 = vld [vmem:[%s989 + $0x78] sm:$0xf]
          %v1021 = vld [vmem:[%s989 + $0x7c] sm:$0xf]
          %v1022 = vld [vmem:[#allocation2] sm:$0xff]
          %v1023 = vld [vmem:[#allocation2 + $0x8] sm:$0xff]
          %v1024 = vld [vmem:[#allocation2 + $0x10] sm:$0xff]
          %v1025 = vld [vmem:[#allocation2 + $0x18] sm:$0xff]
          %v1026 = vld [vmem:[#allocation2 + $0x20] sm:$0xff]
          %v1027 = vld [vmem:[#allocation2 + $0x28] sm:$0xff]
          %v1028 = vld [vmem:[#allocation2 + $0x30] sm:$0xff]
          %v1029 = vld [vmem:[#allocation2 + $0x38] sm:$0xff]
          %v1030 = vld [vmem:[#allocation2 + $0x40] sm:$0xff]
          %v1031 = vld [vmem:[#allocation2 + $0x48] sm:$0xff]
          %v1032 = vld [vmem:[#allocation2 + $0x50] sm:$0xff]
          %v1033 = vld [vmem:[#allocation2 + $0x58] sm:$0xff]
          %v1034 = vld [vmem:[#allocation2 + $0x60] sm:$0xff]
          %v1035 = vld [vmem:[#allocation2 + $0x68] sm:$0xff]
          %v1036 = vld [vmem:[#allocation2 + $0x70] sm:$0xff]
          %v1037 = vld [vmem:[#allocation2 + $0x78] sm:$0xff]
          %v1038 = vld [vmem:[#allocation2 + $0x80] sm:$0xff]
          %v1039 = vld [vmem:[#allocation2 + $0x88] sm:$0xff]
          %v1040 = vld [vmem:[#allocation2 + $0x90] sm:$0xff]
          %v1041 = vld [vmem:[#allocation2 + $0x98] sm:$0xff]
          %v1042 = vld [vmem:[#allocation2 + $0xa0] sm:$0xff]
          %v1043 = vld [vmem:[#allocation2 + $0xa8] sm:$0xff]
          %v1044 = vld [vmem:[#allocation2 + $0xb0] sm:$0xff]
          %v1045 = vld [vmem:[#allocation2 + $0xb8] sm:$0xff]
          %v1046 = vld [vmem:[#allocation2 + $0xc0] sm:$0xff]
          %v1047 = vld [vmem:[#allocation2 + $0xc8] sm:$0xff]
          %v1048 = vld [vmem:[#allocation2 + $0xd0] sm:$0xff]
          %v1049 = vld [vmem:[#allocation2 + $0xd8] sm:$0xff]
          %v1050 = vld [vmem:[#allocation2 + $0xe0] sm:$0xff]
          %v1051 = vld [vmem:[#allocation2 + $0xe8] sm:$0xff]
          %v1052 = vld [vmem:[#allocation2 + $0xf0] sm:$0xff]
          %v1053 = vld [vmem:[#allocation2 + $0xf8] sm:$0xff]
          %v1086 = vunpack.c.l.b16 %v990
          %v1087 = vunpack.c.l.b16 %v991
          %v1088 = vunpack.c.l.b16 %v992
          %v1089 = vunpack.c.l.b16 %v993
          %v1090 = vunpack.c.l.b16 %v994
          %v1091 = vunpack.c.l.b16 %v995
          %v1092 = vunpack.c.l.b16 %v996
          %v1093 = vunpack.c.l.b16 %v997
          %v1094 = vunpack.c.l.b16 %v998
          %v1095 = vunpack.c.l.b16 %v999
          %v1096 = vunpack.c.l.b16 %v1000
          %v1097 = vunpack.c.l.b16 %v1001
          %v1098 = vunpack.c.l.b16 %v1002
          %v1099 = vunpack.c.l.b16 %v1003
          %v1100 = vunpack.c.l.b16 %v1004
          %v1101 = vunpack.c.l.b16 %v1005
          %v1102 = vunpack.c.l.b16 %v1006
          %v1103 = vunpack.c.l.b16 %v1007
          %v1104 = vunpack.c.l.b16 %v1008
          %v1105 = vunpack.c.l.b16 %v1009
          %v1106 = vunpack.c.l.b16 %v1010
          %v1107 = vunpack.c.l.b16 %v1011
          %v1108 = vunpack.c.l.b16 %v1012
          %v1109 = vunpack.c.l.b16 %v1013
          %v1110 = vunpack.c.l.b16 %v1014
          %v1111 = vunpack.c.l.b16 %v1015
          %v1112 = vunpack.c.l.b16 %v1016
          %v1113 = vunpack.c.l.b16 %v1017
          %v1114 = vunpack.c.l.b16 %v1018
          %v1115 = vunpack.c.l.b16 %v1019
          %v1116 = vunpack.c.l.b16 %v1020
          %v1117 = vunpack.c.l.b16 %v1021
          %v1118 = vpack.c.b16 %v1087, %v1086
          %v1119 = vpack.c.b16 %v1089, %v1088
          %v1120 = vpack.c.b16 %v1091, %v1090
          %v1121 = vpack.c.b16 %v1093, %v1092
          %v1122 = vpack.c.b16 %v1095, %v1094
          %v1123 = vpack.c.b16 %v1097, %v1096
          %v1124 = vpack.c.b16 %v1099, %v1098
          %v1125 = vpack.c.b16 %v1101, %v1100
          %v1126 = vpack.c.b16 %v1103, %v1102
          %v1127 = vpack.c.b16 %v1105, %v1104
          %v1128 = vpack.c.b16 %v1107, %v1106
          %v1129 = vpack.c.b16 %v1109, %v1108
          %v1130 = vpack.c.b16 %v1111, %v1110
          %v1131 = vpack.c.b16 %v1113, %v1112
          %v1132 = vpack.c.b16 %v1115, %v1114
          %v1133 = vpack.c.b16 %v1117, %v1116
          %1150 = vmatpush.bf16.msra.mxu0 %v1125
          %1151 = vmatpush.bf16.msra.mxu0 %v1124
          %1152 = vmatpush.bf16.msra.mxu0 %v1123
          %1153 = vmatpush.bf16.msra.mxu0 %v1122
          %1154 = vmatpush.bf16.msra.mxu0 %v1121
          %1155 = vmatpush.bf16.msra.mxu0 %v1120
          %1156 = vmatpush.bf16.msra.mxu0 %v1119
          %1157 = vmatpush.bf16.msra.mxu0 %v1118
          %1158 = vmatmul.bf16.gmra.mxu0 %v945
          %v1159 = vpop.f32.mrf.mxu0
          %v1160 = vadd.f32 0.0, %v1159
          %v1161 = vpop.f32.mrf.mxu0
          %v1162 = vadd.f32 0.0, %v1161
          %1163 = vmatmul.bf16.gmra.mxu0 %v947
          %v1164 = vpop.f32.mrf.mxu0
          %v1165 = vadd.f32 0.0, %v1164
          %v1166 = vpop.f32.mrf.mxu0
          %v1167 = vadd.f32 0.0, %v1166
          %1168 = vmatmul.bf16.gmra.mxu0 %v949
          %v1169 = vpop.f32.mrf.mxu0
          %v1170 = vadd.f32 0.0, %v1169
          %v1171 = vpop.f32.mrf.mxu0
          %v1172 = vadd.f32 0.0, %v1171
          %1173 = vmatmul.bf16.gmra.mxu0 %v951
          %v1174 = vpop.f32.mrf.mxu0
          %v1175 = vadd.f32 0.0, %v1174
          %v1176 = vpop.f32.mrf.mxu0
          %v1177 = vadd.f32 0.0, %v1176
          %1178 = vmatmul.bf16.gmra.mxu0 %v953
          %v1179 = vpop.f32.mrf.mxu0
          %v1180 = vadd.f32 0.0, %v1179
          %v1181 = vpop.f32.mrf.mxu0
          %v1182 = vadd.f32 0.0, %v1181
          %1183 = vmatmul.bf16.gmra.mxu0 %v955
          %v1184 = vpop.f32.mrf.mxu0
          %v1185 = vadd.f32 0.0, %v1184
          %v1186 = vpop.f32.mrf.mxu0
          %v1187 = vadd.f32 0.0, %v1186
          %1188 = vmatmul.bf16.gmra.mxu0 %v957
          %v1189 = vpop.f32.mrf.mxu0
          %v1190 = vadd.f32 0.0, %v1189
          %v1191 = vpop.f32.mrf.mxu0
          %v1192 = vadd.f32 0.0, %v1191
          %1193 = vmatmul.bf16.gmra.mxu0 %v959
          %v1194 = vpop.f32.mrf.mxu0
          %v1195 = vadd.f32 0.0, %v1194
          %v1196 = vpop.f32.mrf.mxu0
          %v1197 = vadd.f32 0.0, %v1196
          %1198 = vmatmul.bf16.gmra.mxu0 %v961
          %v1199 = vpop.f32.mrf.mxu0
          %v1200 = vadd.f32 0.0, %v1199
          %v1201 = vpop.f32.mrf.mxu0
          %v1202 = vadd.f32 0.0, %v1201
          %1203 = vmatmul.bf16.gmra.mxu0 %v963
          %v1204 = vpop.f32.mrf.mxu0
          %v1205 = vadd.f32 0.0, %v1204
          %v1206 = vpop.f32.mrf.mxu0
          %v1207 = vadd.f32 0.0, %v1206
          %1208 = vmatmul.bf16.gmra.mxu0 %v965
          %v1209 = vpop.f32.mrf.mxu0
          %v1210 = vadd.f32 0.0, %v1209
          %v1211 = vpop.f32.mrf.mxu0
          %v1212 = vadd.f32 0.0, %v1211
          %1213 = vmatmul.bf16.gmra.mxu0 %v967
          %v1214 = vpop.f32.mrf.mxu0
          %v1215 = vadd.f32 0.0, %v1214
          %v1216 = vpop.f32.mrf.mxu0
          %v1217 = vadd.f32 0.0, %v1216
          %1218 = vmatmul.bf16.gmra.mxu0 %v969
          %v1219 = vpop.f32.mrf.mxu0
          %v1220 = vadd.f32 0.0, %v1219
          %v1221 = vpop.f32.mrf.mxu0
          %v1222 = vadd.f32 0.0, %v1221
          %1223 = vmatmul.bf16.gmra.mxu0 %v971
          %v1224 = vpop.f32.mrf.mxu0
          %v1225 = vadd.f32 0.0, %v1224
          %v1226 = vpop.f32.mrf.mxu0
          %v1227 = vadd.f32 0.0, %v1226
          %1228 = vmatmul.bf16.gmra.mxu0 %v973
          %v1229 = vpop.f32.mrf.mxu0
          %v1230 = vadd.f32 0.0, %v1229
          %v1231 = vpop.f32.mrf.mxu0
          %v1232 = vadd.f32 0.0, %v1231
          %1233 = vmatmul.bf16.gmra.mxu0 %v975
          %v1234 = vpop.f32.mrf.mxu0
          %v1235 = vadd.f32 0.0, %v1234
          %v1236 = vpop.f32.mrf.mxu0
          %v1237 = vadd.f32 0.0, %v1236
          %1238 = vdwg.mxu0
          %1239 = vmatpush.bf16.msra.mxu0 %v1133
          %1240 = vmatpush.bf16.msra.mxu0 %v1132
          %1241 = vmatpush.bf16.msra.mxu0 %v1131
          %1242 = vmatpush.bf16.msra.mxu0 %v1130
          %1243 = vmatpush.bf16.msra.mxu0 %v1129
          %1244 = vmatpush.bf16.msra.mxu0 %v1128
          %1245 = vmatpush.bf16.msra.mxu0 %v1127
          %1246 = vmatpush.bf16.msra.mxu0 %v1126
          %1247 = vmatmul.bf16.gmra.mxu0 %v946
          %v1248 = vpop.f32.mrf.mxu0
          %v1249 = vadd.f32 %v1160, %v1248
          %v1250 = vpop.f32.mrf.mxu0
          %v1251 = vadd.f32 %v1162, %v1250
          %1252 = vmatmul.bf16.gmra.mxu0 %v948
          %v1253 = vpop.f32.mrf.mxu0
          %v1254 = vadd.f32 %v1165, %v1253
          %v1255 = vpop.f32.mrf.mxu0
          %v1256 = vadd.f32 %v1167, %v1255
          %1257 = vmatmul.bf16.gmra.mxu0 %v950
          %v1258 = vpop.f32.mrf.mxu0
          %v1259 = vadd.f32 %v1170, %v1258
          %v1260 = vpop.f32.mrf.mxu0
          %v1261 = vadd.f32 %v1172, %v1260
          %1262 = vmatmul.bf16.gmra.mxu0 %v952
          %v1263 = vpop.f32.mrf.mxu0
          %v1264 = vadd.f32 %v1175, %v1263
          %v1265 = vpop.f32.mrf.mxu0
          %v1266 = vadd.f32 %v1177, %v1265
          %1267 = vmatmul.bf16.gmra.mxu0 %v954
          %v1268 = vpop.f32.mrf.mxu0
          %v1269 = vadd.f32 %v1180, %v1268
          %v1270 = vpop.f32.mrf.mxu0
          %v1271 = vadd.f32 %v1182, %v1270
          %1272 = vmatmul.bf16.gmra.mxu0 %v956
          %v1273 = vpop.f32.mrf.mxu0
          %v1274 = vadd.f32 %v1185, %v1273
          %v1275 = vpop.f32.mrf.mxu0
          %v1276 = vadd.f32 %v1187, %v1275
          %1277 = vmatmul.bf16.gmra.mxu0 %v958
          %v1278 = vpop.f32.mrf.mxu0
          %v1279 = vadd.f32 %v1190, %v1278
          %v1280 = vpop.f32.mrf.mxu0
          %v1281 = vadd.f32 %v1192, %v1280
          %1282 = vmatmul.bf16.gmra.mxu0 %v960
          %v1283 = vpop.f32.mrf.mxu0
          %v1284 = vadd.f32 %v1195, %v1283
          %v1285 = vpop.f32.mrf.mxu0
          %v1286 = vadd.f32 %v1197, %v1285
          %1287 = vmatmul.bf16.gmra.mxu0 %v962
          %v1288 = vpop.f32.mrf.mxu0
          %v1289 = vadd.f32 %v1200, %v1288
          %v1290 = vpop.f32.mrf.mxu0
          %v1291 = vadd.f32 %v1202, %v1290
          %1292 = vmatmul.bf16.gmra.mxu0 %v964
          %v1293 = vpop.f32.mrf.mxu0
          %v1294 = vadd.f32 %v1205, %v1293
          %v1295 = vpop.f32.mrf.mxu0
          %v1296 = vadd.f32 %v1207, %v1295
          %1297 = vmatmul.bf16.gmra.mxu0 %v966
          %v1298 = vpop.f32.mrf.mxu0
          %v1299 = vadd.f32 %v1210, %v1298
          %v1300 = vpop.f32.mrf.mxu0
          %v1301 = vadd.f32 %v1212, %v1300
          %1302 = vmatmul.bf16.gmra.mxu0 %v968
          %v1303 = vpop.f32.mrf.mxu0
          %v1304 = vadd.f32 %v1215, %v1303
          %v1305 = vpop.f32.mrf.mxu0
          %v1306 = vadd.f32 %v1217, %v1305
          %1307 = vmatmul.bf16.gmra.mxu0 %v970
          %v1308 = vpop.f32.mrf.mxu0
          %v1309 = vadd.f32 %v1220, %v1308
          %v1310 = vpop.f32.mrf.mxu0
          %v1311 = vadd.f32 %v1222, %v1310
          %1312 = vmatmul.bf16.gmra.mxu0 %v972
          %v1313 = vpop.f32.mrf.mxu0
          %v1314 = vadd.f32 %v1225, %v1313
          %v1315 = vpop.f32.mrf.mxu0
          %v1316 = vadd.f32 %v1227, %v1315
          %1317 = vmatmul.bf16.gmra.mxu0 %v974
          %v1318 = vpop.f32.mrf.mxu0
          %v1319 = vadd.f32 %v1230, %v1318
          %v1320 = vpop.f32.mrf.mxu0
          %v1321 = vadd.f32 %v1232, %v1320
          %1322 = vmatmul.bf16.gmra.mxu0 %v976
          %v1323 = vpop.f32.mrf.mxu0
          %v1324 = vadd.f32 %v1235, %v1323
          %v1325 = vpop.f32.mrf.mxu0
          %v1326 = vadd.f32 %v1237, %v1325
          %1327 = vdwg.mxu0
          %v1328 = vadd.f32 %v1022, %v1249
          %v1329 = vadd.f32 %v1023, %v1251
          %v1330 = vadd.f32 %v1024, %v1254
          %v1331 = vadd.f32 %v1025, %v1256
          %v1332 = vadd.f32 %v1026, %v1259
          %v1333 = vadd.f32 %v1027, %v1261
          %v1334 = vadd.f32 %v1028, %v1264
          %v1335 = vadd.f32 %v1029, %v1266
          %v1336 = vadd.f32 %v1030, %v1269
          %v1337 = vadd.f32 %v1031, %v1271
          %v1338 = vadd.f32 %v1032, %v1274
          %v1339 = vadd.f32 %v1033, %v1276
          %v1340 = vadd.f32 %v1034, %v1279
          %v1341 = vadd.f32 %v1035, %v1281
          %v1342 = vadd.f32 %v1036, %v1284
          %v1343 = vadd.f32 %v1037, %v1286
          %v1344 = vadd.f32 %v1038, %v1289
          %v1345 = vadd.f32 %v1039, %v1291
          %v1346 = vadd.f32 %v1040, %v1294
          %v1347 = vadd.f32 %v1041, %v1296
          %v1348 = vadd.f32 %v1042, %v1299
          %v1349 = vadd.f32 %v1043, %v1301
          %v1350 = vadd.f32 %v1044, %v1304
          %v1351 = vadd.f32 %v1045, %v1306
          %v1352 = vadd.f32 %v1046, %v1309
          %v1353 = vadd.f32 %v1047, %v1311
          %v1354 = vadd.f32 %v1048, %v1314
          %v1355 = vadd.f32 %v1049, %v1316
          %v1356 = vadd.f32 %v1050, %v1319
          %v1357 = vadd.f32 %v1051, %v1321
          %v1358 = vadd.f32 %v1052, %v1324
          %v1359 = vadd.f32 %v1053, %v1326
          %1360 = vst [vmem:[#allocation2] sm:$0xff] %v1328
          %1361 = vst [vmem:[#allocation2 + $0x8] sm:$0xff] %v1329
          %1362 = vst [vmem:[#allocation2 + $0x10] sm:$0xff] %v1330
          %1363 = vst [vmem:[#allocation2 + $0x18] sm:$0xff] %v1331
          %1364 = vst [vmem:[#allocation2 + $0x20] sm:$0xff] %v1332
          %1365 = vst [vmem:[#allocation2 + $0x28] sm:$0xff] %v1333
          %1366 = vst [vmem:[#allocation2 + $0x30] sm:$0xff] %v1334
          %1367 = vst [vmem:[#allocation2 + $0x38] sm:$0xff] %v1335
          %1368 = vst [vmem:[#allocation2 + $0x40] sm:$0xff] %v1336
          %1369 = vst [vmem:[#allocation2 + $0x48] sm:$0xff] %v1337
          %1370 = vst [vmem:[#allocation2 + $0x50] sm:$0xff] %v1338
          %1371 = vst [vmem:[#allocation2 + $0x58] sm:$0xff] %v1339
          %1372 = vst [vmem:[#allocation2 + $0x60] sm:$0xff] %v1340
          %1373 = vst [vmem:[#allocation2 + $0x68] sm:$0xff] %v1341
          %1374 = vst [vmem:[#allocation2 + $0x70] sm:$0xff] %v1342
          %1375 = vst [vmem:[#allocation2 + $0x78] sm:$0xff] %v1343
          %1376 = vst [vmem:[#allocation2 + $0x80] sm:$0xff] %v1344
          %1377 = vst [vmem:[#allocation2 + $0x88] sm:$0xff] %v1345
          %1378 = vst [vmem:[#allocation2 + $0x90] sm:$0xff] %v1346
          %1379 = vst [vmem:[#allocation2 + $0x98] sm:$0xff] %v1347
          %1380 = vst [vmem:[#allocation2 + $0xa0] sm:$0xff] %v1348
          %1381 = vst [vmem:[#allocation2 + $0xa8] sm:$0xff] %v1349
          %1382 = vst [vmem:[#allocation2 + $0xb0] sm:$0xff] %v1350
          %1383 = vst [vmem:[#allocation2 + $0xb8] sm:$0xff] %v1351
          %1384 = vst [vmem:[#allocation2 + $0xc0] sm:$0xff] %v1352
          %1385 = vst [vmem:[#allocation2 + $0xc8] sm:$0xff] %v1353
          %1386 = vst [vmem:[#allocation2 + $0xd0] sm:$0xff] %v1354
          %1387 = vst [vmem:[#allocation2 + $0xd8] sm:$0xff] %v1355
          %1388 = vst [vmem:[#allocation2 + $0xe0] sm:$0xff] %v1356
          %1389 = vst [vmem:[#allocation2 + $0xe8] sm:$0xff] %v1357
          %1390 = vst [vmem:[#allocation2 + $0xf0] sm:$0xff] %v1358
          %1391 = vst [vmem:[#allocation2 + $0xf8] sm:$0xff] %v1359
        $region68: #{tpu_custom_call.1} parent=47 // pred_fallthru
          _
        %p1392 = scmp.eq.s32.totalorder %s45, 2
        // Predicated region
        $region69: #{tpu_custom_call.1} parent=47 // pred_check
          %p1393 = pneg %p1392
        $region70: #{tpu_custom_call.1} parent=47 // pred_check_branch
          %1395 = sbr.rel (%p1393) target = $region72
        $region71: #{tpu_custom_call.1} parent=47 // pred_region
          %v1396 = vld [vmem:[#allocation2] sm:$0xff]
          %v1397 = vld [vmem:[#allocation2 + $0x8] sm:$0xff]
          %v1398 = vld [vmem:[#allocation2 + $0x10] sm:$0xff]
          %v1399 = vld [vmem:[#allocation2 + $0x18] sm:$0xff]
          %v1400 = vld [vmem:[#allocation2 + $0x20] sm:$0xff]
          %v1401 = vld [vmem:[#allocation2 + $0x28] sm:$0xff]
          %v1402 = vld [vmem:[#allocation2 + $0x30] sm:$0xff]
          %v1403 = vld [vmem:[#allocation2 + $0x38] sm:$0xff]
          %v1404 = vld [vmem:[#allocation2 + $0x40] sm:$0xff]
          %v1405 = vld [vmem:[#allocation2 + $0x48] sm:$0xff]
          %v1406 = vld [vmem:[#allocation2 + $0x50] sm:$0xff]
          %v1407 = vld [vmem:[#allocation2 + $0x58] sm:$0xff]
          %v1408 = vld [vmem:[#allocation2 + $0x60] sm:$0xff]
          %v1409 = vld [vmem:[#allocation2 + $0x68] sm:$0xff]
          %v1410 = vld [vmem:[#allocation2 + $0x70] sm:$0xff]
          %v1411 = vld [vmem:[#allocation2 + $0x78] sm:$0xff]
          %v1412 = vld [vmem:[%s440] sm:$0xff]
          %v1413 = vld [vmem:[%s440 + $0x8] sm:$0xff]
          %v1414 = vld [vmem:[%s440 + $0x10] sm:$0xff]
          %v1415 = vld [vmem:[%s440 + $0x18] sm:$0xff]
          %v1416 = vld [vmem:[%s440 + $0x20] sm:$0xff]
          %v1417 = vld [vmem:[%s440 + $0x28] sm:$0xff]
          %v1418 = vld [vmem:[%s440 + $0x30] sm:$0xff]
          %v1419 = vld [vmem:[%s440 + $0x38] sm:$0xff]
          %v1420 = vld [vmem:[%s440 + $0x40] sm:$0xff]
          %v1421 = vld [vmem:[%s440 + $0x48] sm:$0xff]
          %v1422 = vld [vmem:[%s440 + $0x50] sm:$0xff]
          %v1423 = vld [vmem:[%s440 + $0x58] sm:$0xff]
          %v1424 = vld [vmem:[%s440 + $0x60] sm:$0xff]
          %v1425 = vld [vmem:[%s440 + $0x68] sm:$0xff]
          %v1426 = vld [vmem:[%s440 + $0x70] sm:$0xff]
          %v1427 = vld [vmem:[%s440 + $0x78] sm:$0xff]
          %1429 = vset.pattern.permute.xlu0 0
          %1430 = vperm.xlu0 %1429, %v1412
          %v1431 = vpop.permute.xlu0 %1430
          %1434 = vset.pattern.permute.xlu0 0
          %1435 = vperm.xlu0 %1434, %v1413
          %v1436 = vpop.permute.xlu0 %1435
          %1439 = vset.pattern.permute.xlu0 0
          %1440 = vperm.xlu0 %1439, %v1414
          %v1441 = vpop.permute.xlu0 %1440
          %1444 = vset.pattern.permute.xlu0 0
          %1445 = vperm.xlu0 %1444, %v1415
          %v1446 = vpop.permute.xlu0 %1445
          %1449 = vset.pattern.permute.xlu0 0
          %1450 = vperm.xlu0 %1449, %v1416
          %v1451 = vpop.permute.xlu0 %1450
          %1454 = vset.pattern.permute.xlu0 0
          %1455 = vperm.xlu0 %1454, %v1417
          %v1456 = vpop.permute.xlu0 %1455
          %1459 = vset.pattern.permute.xlu0 0
          %1460 = vperm.xlu0 %1459, %v1418
          %v1461 = vpop.permute.xlu0 %1460
          %1464 = vset.pattern.permute.xlu0 0
          %1465 = vperm.xlu0 %1464, %v1419
          %v1466 = vpop.permute.xlu0 %1465
          %1469 = vset.pattern.permute.xlu0 0
          %1470 = vperm.xlu0 %1469, %v1420
          %v1471 = vpop.permute.xlu0 %1470
          %1474 = vset.pattern.permute.xlu0 0
          %1475 = vperm.xlu0 %1474, %v1421
          %v1476 = vpop.permute.xlu0 %1475
          %1479 = vset.pattern.permute.xlu0 0
          %1480 = vperm.xlu0 %1479, %v1422
          %v1481 = vpop.permute.xlu0 %1480
          %1484 = vset.pattern.permute.xlu0 0
          %1485 = vperm.xlu0 %1484, %v1423
          %v1486 = vpop.permute.xlu0 %1485
          %1489 = vset.pattern.permute.xlu0 0
          %1490 = vperm.xlu0 %1489, %v1424
          %v1491 = vpop.permute.xlu0 %1490
          %1494 = vset.pattern.permute.xlu0 0
          %1495 = vperm.xlu0 %1494, %v1425
          %v1496 = vpop.permute.xlu0 %1495
          %1499 = vset.pattern.permute.xlu0 0
          %1500 = vperm.xlu0 %1499, %v1426
          %v1501 = vpop.permute.xlu0 %1500
          %1504 = vset.pattern.permute.xlu0 0
          %1505 = vperm.xlu0 %1504, %v1427
          %v1506 = vpop.permute.xlu0 %1505
          %v1508 = vmul.f32 %v1396, %v1431
          %v1509 = vmul.f32 %v1397, %v1436
          %v1510 = vmul.f32 %v1398, %v1441
          %v1511 = vmul.f32 %v1399, %v1446
          %v1512 = vmul.f32 %v1400, %v1451
          %v1513 = vmul.f32 %v1401, %v1456
          %v1514 = vmul.f32 %v1402, %v1461
          %v1515 = vmul.f32 %v1403, %v1466
          %v1516 = vmul.f32 %v1404, %v1471
          %v1517 = vmul.f32 %v1405, %v1476
          %v1518 = vmul.f32 %v1406, %v1481
          %v1519 = vmul.f32 %v1407, %v1486
          %v1520 = vmul.f32 %v1408, %v1491
          %v1521 = vmul.f32 %v1409, %v1496
          %v1522 = vmul.f32 %v1410, %v1501
          %v1523 = vmul.f32 %v1411, %v1506
          %v1524 = vpack.c.bf16 %v1509, %v1508
          %v1525 = vpack.c.bf16 %v1511, %v1510
          %v1526 = vpack.c.bf16 %v1513, %v1512
          %v1527 = vpack.c.bf16 %v1515, %v1514
          %v1528 = vpack.c.bf16 %v1517, %v1516
          %v1529 = vpack.c.bf16 %v1519, %v1518
          %v1530 = vpack.c.bf16 %v1521, %v1520
          %v1531 = vpack.c.bf16 %v1523, %v1522
          %v1532 = vld [vmem:[#allocation3] sm:$0xff]
          %v1533 = vld [vmem:[#allocation3 + $0x8] sm:$0xff]
          %v1534 = vld [vmem:[#allocation3 + $0x10] sm:$0xff]
          %v1535 = vld [vmem:[#allocation3 + $0x18] sm:$0xff]
          %v1536 = vld [vmem:[#allocation3 + $0x20] sm:$0xff]
          %v1537 = vld [vmem:[#allocation3 + $0x28] sm:$0xff]
          %v1538 = vld [vmem:[#allocation3 + $0x30] sm:$0xff]
          %v1539 = vld [vmem:[#allocation3 + $0x38] sm:$0xff]
          %v1540 = vld [vmem:[#allocation3 + $0x40] sm:$0xff]
          %v1541 = vld [vmem:[#allocation3 + $0x48] sm:$0xff]
          %v1542 = vld [vmem:[#allocation3 + $0x50] sm:$0xff]
          %v1543 = vld [vmem:[#allocation3 + $0x58] sm:$0xff]
          %v1544 = vld [vmem:[#allocation3 + $0x60] sm:$0xff]
          %v1545 = vld [vmem:[#allocation3 + $0x68] sm:$0xff]
          %v1546 = vld [vmem:[#allocation3 + $0x70] sm:$0xff]
          %v1547 = vld [vmem:[#allocation3 + $0x78] sm:$0xff]
          %v1548 = vld [vmem:[#allocation10] sm:$0xf]
          %v1549 = vld [vmem:[#allocation10 + $0x4] sm:$0xf]
          %v1550 = vld [vmem:[#allocation10 + $0x8] sm:$0xf]
          %v1551 = vld [vmem:[#allocation10 + $0xc] sm:$0xf]
          %v1552 = vld [vmem:[#allocation10 + $0x10] sm:$0xf]
          %v1553 = vld [vmem:[#allocation10 + $0x14] sm:$0xf]
          %v1554 = vld [vmem:[#allocation10 + $0x18] sm:$0xf]
          %v1555 = vld [vmem:[#allocation10 + $0x1c] sm:$0xf]
          %v1556 = vld [vmem:[#allocation10 + $0x20] sm:$0xf]
          %v1557 = vld [vmem:[#allocation10 + $0x24] sm:$0xf]
          %v1558 = vld [vmem:[#allocation10 + $0x28] sm:$0xf]
          %v1559 = vld [vmem:[#allocation10 + $0x2c] sm:$0xf]
          %v1560 = vld [vmem:[#allocation10 + $0x30] sm:$0xf]
          %v1561 = vld [vmem:[#allocation10 + $0x34] sm:$0xf]
          %v1562 = vld [vmem:[#allocation10 + $0x38] sm:$0xf]
          %v1563 = vld [vmem:[#allocation10 + $0x3c] sm:$0xf]
          %v1580 = vunpack.c.l.b16 %v1548
          %v1581 = vunpack.c.l.b16 %v1549
          %v1582 = vunpack.c.l.b16 %v1550
          %v1583 = vunpack.c.l.b16 %v1551
          %v1584 = vunpack.c.l.b16 %v1552
          %v1585 = vunpack.c.l.b16 %v1553
          %v1586 = vunpack.c.l.b16 %v1554
          %v1587 = vunpack.c.l.b16 %v1555
          %v1588 = vunpack.c.l.b16 %v1556
          %v1589 = vunpack.c.l.b16 %v1557
          %v1590 = vunpack.c.l.b16 %v1558
          %v1591 = vunpack.c.l.b16 %v1559
          %v1592 = vunpack.c.l.b16 %v1560
          %v1593 = vunpack.c.l.b16 %v1561
          %v1594 = vunpack.c.l.b16 %v1562
          %v1595 = vunpack.c.l.b16 %v1563
          %v1596 = vpack.c.b16 %v1581, %v1580
          %v1597 = vpack.c.b16 %v1583, %v1582
          %v1598 = vpack.c.b16 %v1585, %v1584
          %v1599 = vpack.c.b16 %v1587, %v1586
          %v1600 = vpack.c.b16 %v1589, %v1588
          %v1601 = vpack.c.b16 %v1591, %v1590
          %v1602 = vpack.c.b16 %v1593, %v1592
          %v1603 = vpack.c.b16 %v1595, %v1594
          %1612 = vmatpush.bf16.msra.mxu0 %v1603
          %1613 = vmatpush.bf16.msra.mxu0 %v1602
          %1614 = vmatpush.bf16.msra.mxu0 %v1601
          %1615 = vmatpush.bf16.msra.mxu0 %v1600
          %1616 = vmatpush.bf16.msra.mxu0 %v1599
          %1617 = vmatpush.bf16.msra.mxu0 %v1598
          %1618 = vmatpush.bf16.msra.mxu0 %v1597
          %1619 = vmatpush.bf16.msra.mxu0 %v1596
          %1620 = vmatmul.bf16.gmra.mxu0 %v1524
          %v1621 = vpop.f32.mrf.mxu0
          %v1622 = vadd.f32 0.0, %v1621
          %v1623 = vpop.f32.mrf.mxu0
          %v1624 = vadd.f32 0.0, %v1623
          %1625 = vmatmul.bf16.gmra.mxu0 %v1525
          %v1626 = vpop.f32.mrf.mxu0
          %v1627 = vadd.f32 0.0, %v1626
          %v1628 = vpop.f32.mrf.mxu0
          %v1629 = vadd.f32 0.0, %v1628
          %1630 = vmatmul.bf16.gmra.mxu0 %v1526
          %v1631 = vpop.f32.mrf.mxu0
          %v1632 = vadd.f32 0.0, %v1631
          %v1633 = vpop.f32.mrf.mxu0
          %v1634 = vadd.f32 0.0, %v1633
          %1635 = vmatmul.bf16.gmra.mxu0 %v1527
          %v1636 = vpop.f32.mrf.mxu0
          %v1637 = vadd.f32 0.0, %v1636
          %v1638 = vpop.f32.mrf.mxu0
          %v1639 = vadd.f32 0.0, %v1638
          %1640 = vmatmul.bf16.gmra.mxu0 %v1528
          %v1641 = vpop.f32.mrf.mxu0
          %v1642 = vadd.f32 0.0, %v1641
          %v1643 = vpop.f32.mrf.mxu0
          %v1644 = vadd.f32 0.0, %v1643
          %1645 = vmatmul.bf16.gmra.mxu0 %v1529
          %v1646 = vpop.f32.mrf.mxu0
          %v1647 = vadd.f32 0.0, %v1646
          %v1648 = vpop.f32.mrf.mxu0
          %v1649 = vadd.f32 0.0, %v1648
          %1650 = vmatmul.bf16.gmra.mxu0 %v1530
          %v1651 = vpop.f32.mrf.mxu0
          %v1652 = vadd.f32 0.0, %v1651
          %v1653 = vpop.f32.mrf.mxu0
          %v1654 = vadd.f32 0.0, %v1653
          %1655 = vmatmul.bf16.gmra.mxu0 %v1531
          %v1656 = vpop.f32.mrf.mxu0
          %v1657 = vadd.f32 0.0, %v1656
          %v1658 = vpop.f32.mrf.mxu0
          %v1659 = vadd.f32 0.0, %v1658
          %1660 = vdwg.mxu0
          %v1661 = vadd.f32 %v1532, %v1622
          %v1662 = vadd.f32 %v1533, %v1624
          %v1663 = vadd.f32 %v1534, %v1627
          %v1664 = vadd.f32 %v1535, %v1629
          %v1665 = vadd.f32 %v1536, %v1632
          %v1666 = vadd.f32 %v1537, %v1634
          %v1667 = vadd.f32 %v1538, %v1637
          %v1668 = vadd.f32 %v1539, %v1639
          %v1669 = vadd.f32 %v1540, %v1642
          %v1670 = vadd.f32 %v1541, %v1644
          %v1671 = vadd.f32 %v1542, %v1647
          %v1672 = vadd.f32 %v1543, %v1649
          %v1673 = vadd.f32 %v1544, %v1652
          %v1674 = vadd.f32 %v1545, %v1654
          %v1675 = vadd.f32 %v1546, %v1657
          %v1676 = vadd.f32 %v1547, %v1659
          %v1677 = vmax.f32 %v1661, 0.0
          %v1678 = vmax.f32 %v1662, 0.0
          %v1679 = vmax.f32 %v1663, 0.0
          %v1680 = vmax.f32 %v1664, 0.0
          %v1681 = vmax.f32 %v1665, 0.0
          %v1682 = vmax.f32 %v1666, 0.0
          %v1683 = vmax.f32 %v1667, 0.0
          %v1684 = vmax.f32 %v1668, 0.0
          %v1685 = vmax.f32 %v1669, 0.0
          %v1686 = vmax.f32 %v1670, 0.0
          %v1687 = vmax.f32 %v1671, 0.0
          %v1688 = vmax.f32 %v1672, 0.0
          %v1689 = vmax.f32 %v1673, 0.0
          %v1690 = vmax.f32 %v1674, 0.0
          %v1691 = vmax.f32 %v1675, 0.0
          %v1692 = vmax.f32 %v1676, 0.0
          %v1693 = vpack.c.bf16 %v1677, %v1677
          %v1694 = vpack.c.bf16 %v1678, %v1678
          %v1695 = vpack.c.bf16 %v1679, %v1679
          %v1696 = vpack.c.bf16 %v1680, %v1680
          %v1697 = vpack.c.bf16 %v1681, %v1681
          %v1698 = vpack.c.bf16 %v1682, %v1682
          %v1699 = vpack.c.bf16 %v1683, %v1683
          %v1700 = vpack.c.bf16 %v1684, %v1684
          %v1701 = vpack.c.bf16 %v1685, %v1685
          %v1702 = vpack.c.bf16 %v1686, %v1686
          %v1703 = vpack.c.bf16 %v1687, %v1687
          %v1704 = vpack.c.bf16 %v1688, %v1688
          %v1705 = vpack.c.bf16 %v1689, %v1689
          %v1706 = vpack.c.bf16 %v1690, %v1690
          %v1707 = vpack.c.bf16 %v1691, %v1691
          %v1708 = vpack.c.bf16 %v1692, %v1692
          %1709 = vst [vmem:[%s419] sm:$0xf] %v1693
          %1710 = vst [vmem:[%s419 + $0x4] sm:$0xf] %v1694
          %1711 = vst [vmem:[%s419 + $0x8] sm:$0xf] %v1695
          %1712 = vst [vmem:[%s419 + $0xc] sm:$0xf] %v1696
          %1713 = vst [vmem:[%s419 + $0x10] sm:$0xf] %v1697
          %1714 = vst [vmem:[%s419 + $0x14] sm:$0xf] %v1698
          %1715 = vst [vmem:[%s419 + $0x18] sm:$0xf] %v1699
          %1716 = vst [vmem:[%s419 + $0x1c] sm:$0xf] %v1700
          %1717 = vst [vmem:[%s419 + $0x20] sm:$0xf] %v1701
          %1718 = vst [vmem:[%s419 + $0x24] sm:$0xf] %v1702
          %1719 = vst [vmem:[%s419 + $0x28] sm:$0xf] %v1703
          %1720 = vst [vmem:[%s419 + $0x2c] sm:$0xf] %v1704
          %1721 = vst [vmem:[%s419 + $0x30] sm:$0xf] %v1705
          %1722 = vst [vmem:[%s419 + $0x34] sm:$0xf] %v1706
          %1723 = vst [vmem:[%s419 + $0x38] sm:$0xf] %v1707
          %1724 = vst [vmem:[%s419 + $0x3c] sm:$0xf] %v1708
          %v1725 = vld [vmem:[#allocation2 + $0x80] sm:$0xff]
          %v1726 = vld [vmem:[#allocation2 + $0x88] sm:$0xff]
          %v1727 = vld [vmem:[#allocation2 + $0x90] sm:$0xff]
          %v1728 = vld [vmem:[#allocation2 + $0x98] sm:$0xff]
          %v1729 = vld [vmem:[#allocation2 + $0xa0] sm:$0xff]
          %v1730 = vld [vmem:[#allocation2 + $0xa8] sm:$0xff]
          %v1731 = vld [vmem:[#allocation2 + $0xb0] sm:$0xff]
          %v1732 = vld [vmem:[#allocation2 + $0xb8] sm:$0xff]
          %v1733 = vld [vmem:[#allocation2 + $0xc0] sm:$0xff]
          %v1734 = vld [vmem:[#allocation2 + $0xc8] sm:$0xff]
          %v1735 = vld [vmem:[#allocation2 + $0xd0] sm:$0xff]
          %v1736 = vld [vmem:[#allocation2 + $0xd8] sm:$0xff]
          %v1737 = vld [vmem:[#allocation2 + $0xe0] sm:$0xff]
          %v1738 = vld [vmem:[#allocation2 + $0xe8] sm:$0xff]
          %v1739 = vld [vmem:[#allocation2 + $0xf0] sm:$0xff]
          %v1740 = vld [vmem:[#allocation2 + $0xf8] sm:$0xff]
          %v1741 = vld [vmem:[%s440 + $0x80] sm:$0xff]
          %v1742 = vld [vmem:[%s440 + $0x88] sm:$0xff]
          %v1743 = vld [vmem:[%s440 + $0x90] sm:$0xff]
          %v1744 = vld [vmem:[%s440 + $0x98] sm:$0xff]
          %v1745 = vld [vmem:[%s440 + $0xa0] sm:$0xff]
          %v1746 = vld [vmem:[%s440 + $0xa8] sm:$0xff]
          %v1747 = vld [vmem:[%s440 + $0xb0] sm:$0xff]
          %v1748 = vld [vmem:[%s440 + $0xb8] sm:$0xff]
          %v1749 = vld [vmem:[%s440 + $0xc0] sm:$0xff]
          %v1750 = vld [vmem:[%s440 + $0xc8] sm:$0xff]
          %v1751 = vld [vmem:[%s440 + $0xd0] sm:$0xff]
          %v1752 = vld [vmem:[%s440 + $0xd8] sm:$0xff]
          %v1753 = vld [vmem:[%s440 + $0xe0] sm:$0xff]
          %v1754 = vld [vmem:[%s440 + $0xe8] sm:$0xff]
          %v1755 = vld [vmem:[%s440 + $0xf0] sm:$0xff]
          %v1756 = vld [vmem:[%s440 + $0xf8] sm:$0xff]
          %1758 = vset.pattern.permute.xlu0 0
          %1759 = vperm.xlu0 %1758, %v1741
          %v1760 = vpop.permute.xlu0 %1759
          %1763 = vset.pattern.permute.xlu0 0
          %1764 = vperm.xlu0 %1763, %v1742
          %v1765 = vpop.permute.xlu0 %1764
          %1768 = vset.pattern.permute.xlu0 0
          %1769 = vperm.xlu0 %1768, %v1743
          %v1770 = vpop.permute.xlu0 %1769
          %1773 = vset.pattern.permute.xlu0 0
          %1774 = vperm.xlu0 %1773, %v1744
          %v1775 = vpop.permute.xlu0 %1774
          %1778 = vset.pattern.permute.xlu0 0
          %1779 = vperm.xlu0 %1778, %v1745
          %v1780 = vpop.permute.xlu0 %1779
          %1783 = vset.pattern.permute.xlu0 0
          %1784 = vperm.xlu0 %1783, %v1746
          %v1785 = vpop.permute.xlu0 %1784
          %1788 = vset.pattern.permute.xlu0 0
          %1789 = vperm.xlu0 %1788, %v1747
          %v1790 = vpop.permute.xlu0 %1789
          %1793 = vset.pattern.permute.xlu0 0
          %1794 = vperm.xlu0 %1793, %v1748
          %v1795 = vpop.permute.xlu0 %1794
          %1798 = vset.pattern.permute.xlu0 0
          %1799 = vperm.xlu0 %1798, %v1749
          %v1800 = vpop.permute.xlu0 %1799
          %1803 = vset.pattern.permute.xlu0 0
          %1804 = vperm.xlu0 %1803, %v1750
          %v1805 = vpop.permute.xlu0 %1804
          %1808 = vset.pattern.permute.xlu0 0
          %1809 = vperm.xlu0 %1808, %v1751
          %v1810 = vpop.permute.xlu0 %1809
          %1813 = vset.pattern.permute.xlu0 0
          %1814 = vperm.xlu0 %1813, %v1752
          %v1815 = vpop.permute.xlu0 %1814
          %1818 = vset.pattern.permute.xlu0 0
          %1819 = vperm.xlu0 %1818, %v1753
          %v1820 = vpop.permute.xlu0 %1819
          %1823 = vset.pattern.permute.xlu0 0
          %1824 = vperm.xlu0 %1823, %v1754
          %v1825 = vpop.permute.xlu0 %1824
          %1828 = vset.pattern.permute.xlu0 0
          %1829 = vperm.xlu0 %1828, %v1755
          %v1830 = vpop.permute.xlu0 %1829
          %1833 = vset.pattern.permute.xlu0 0
          %1834 = vperm.xlu0 %1833, %v1756
          %v1835 = vpop.permute.xlu0 %1834
          %v1837 = vmul.f32 %v1725, %v1760
          %v1838 = vmul.f32 %v1726, %v1765
          %v1839 = vmul.f32 %v1727, %v1770
          %v1840 = vmul.f32 %v1728, %v1775
          %v1841 = vmul.f32 %v1729, %v1780
          %v1842 = vmul.f32 %v1730, %v1785
          %v1843 = vmul.f32 %v1731, %v1790
          %v1844 = vmul.f32 %v1732, %v1795
          %v1845 = vmul.f32 %v1733, %v1800
          %v1846 = vmul.f32 %v1734, %v1805
          %v1847 = vmul.f32 %v1735, %v1810
          %v1848 = vmul.f32 %v1736, %v1815
          %v1849 = vmul.f32 %v1737, %v1820
          %v1850 = vmul.f32 %v1738, %v1825
          %v1851 = vmul.f32 %v1739, %v1830
          %v1852 = vmul.f32 %v1740, %v1835
          %v1853 = vpack.c.bf16 %v1838, %v1837
          %v1854 = vpack.c.bf16 %v1840, %v1839
          %v1855 = vpack.c.bf16 %v1842, %v1841
          %v1856 = vpack.c.bf16 %v1844, %v1843
          %v1857 = vpack.c.bf16 %v1846, %v1845
          %v1858 = vpack.c.bf16 %v1848, %v1847
          %v1859 = vpack.c.bf16 %v1850, %v1849
          %v1860 = vpack.c.bf16 %v1852, %v1851
          %v1861 = vld [vmem:[#allocation3 + $0x80] sm:$0xff]
          %v1862 = vld [vmem:[#allocation3 + $0x88] sm:$0xff]
          %v1863 = vld [vmem:[#allocation3 + $0x90] sm:$0xff]
          %v1864 = vld [vmem:[#allocation3 + $0x98] sm:$0xff]
          %v1865 = vld [vmem:[#allocation3 + $0xa0] sm:$0xff]
          %v1866 = vld [vmem:[#allocation3 + $0xa8] sm:$0xff]
          %v1867 = vld [vmem:[#allocation3 + $0xb0] sm:$0xff]
          %v1868 = vld [vmem:[#allocation3 + $0xb8] sm:$0xff]
          %v1869 = vld [vmem:[#allocation3 + $0xc0] sm:$0xff]
          %v1870 = vld [vmem:[#allocation3 + $0xc8] sm:$0xff]
          %v1871 = vld [vmem:[#allocation3 + $0xd0] sm:$0xff]
          %v1872 = vld [vmem:[#allocation3 + $0xd8] sm:$0xff]
          %v1873 = vld [vmem:[#allocation3 + $0xe0] sm:$0xff]
          %v1874 = vld [vmem:[#allocation3 + $0xe8] sm:$0xff]
          %v1875 = vld [vmem:[#allocation3 + $0xf0] sm:$0xff]
          %v1876 = vld [vmem:[#allocation3 + $0xf8] sm:$0xff]
          %v1877 = vld [vmem:[#allocation10] sm:$0xf]
          %v1878 = vld [vmem:[#allocation10 + $0x4] sm:$0xf]
          %v1879 = vld [vmem:[#allocation10 + $0x8] sm:$0xf]
          %v1880 = vld [vmem:[#allocation10 + $0xc] sm:$0xf]
          %v1881 = vld [vmem:[#allocation10 + $0x10] sm:$0xf]
          %v1882 = vld [vmem:[#allocation10 + $0x14] sm:$0xf]
          %v1883 = vld [vmem:[#allocation10 + $0x18] sm:$0xf]
          %v1884 = vld [vmem:[#allocation10 + $0x1c] sm:$0xf]
          %v1885 = vld [vmem:[#allocation10 + $0x20] sm:$0xf]
          %v1886 = vld [vmem:[#allocation10 + $0x24] sm:$0xf]
          %v1887 = vld [vmem:[#allocation10 + $0x28] sm:$0xf]
          %v1888 = vld [vmem:[#allocation10 + $0x2c] sm:$0xf]
          %v1889 = vld [vmem:[#allocation10 + $0x30] sm:$0xf]
          %v1890 = vld [vmem:[#allocation10 + $0x34] sm:$0xf]
          %v1891 = vld [vmem:[#allocation10 + $0x38] sm:$0xf]
          %v1892 = vld [vmem:[#allocation10 + $0x3c] sm:$0xf]
          %v1909 = vunpack.c.l.b16 %v1877
          %v1910 = vunpack.c.l.b16 %v1878
          %v1911 = vunpack.c.l.b16 %v1879
          %v1912 = vunpack.c.l.b16 %v1880
          %v1913 = vunpack.c.l.b16 %v1881
          %v1914 = vunpack.c.l.b16 %v1882
          %v1915 = vunpack.c.l.b16 %v1883
          %v1916 = vunpack.c.l.b16 %v1884
          %v1917 = vunpack.c.l.b16 %v1885
          %v1918 = vunpack.c.l.b16 %v1886
          %v1919 = vunpack.c.l.b16 %v1887
          %v1920 = vunpack.c.l.b16 %v1888
          %v1921 = vunpack.c.l.b16 %v1889
          %v1922 = vunpack.c.l.b16 %v1890
          %v1923 = vunpack.c.l.b16 %v1891
          %v1924 = vunpack.c.l.b16 %v1892
          %v1925 = vpack.c.b16 %v1910, %v1909
          %v1926 = vpack.c.b16 %v1912, %v1911
          %v1927 = vpack.c.b16 %v1914, %v1913
          %v1928 = vpack.c.b16 %v1916, %v1915
          %v1929 = vpack.c.b16 %v1918, %v1917
          %v1930 = vpack.c.b16 %v1920, %v1919
          %v1931 = vpack.c.b16 %v1922, %v1921
          %v1932 = vpack.c.b16 %v1924, %v1923
          %1941 = vmatpush.bf16.msra.mxu0 %v1932
          %1942 = vmatpush.bf16.msra.mxu0 %v1931
          %1943 = vmatpush.bf16.msra.mxu0 %v1930
          %1944 = vmatpush.bf16.msra.mxu0 %v1929
          %1945 = vmatpush.bf16.msra.mxu0 %v1928
          %1946 = vmatpush.bf16.msra.mxu0 %v1927
          %1947 = vmatpush.bf16.msra.mxu0 %v1926
          %1948 = vmatpush.bf16.msra.mxu0 %v1925
          %1949 = vmatmul.bf16.gmra.mxu0 %v1853
          %v1950 = vpop.f32.mrf.mxu0
          %v1951 = vadd.f32 0.0, %v1950
          %v1952 = vpop.f32.mrf.mxu0
          %v1953 = vadd.f32 0.0, %v1952
          %1954 = vmatmul.bf16.gmra.mxu0 %v1854
          %v1955 = vpop.f32.mrf.mxu0
          %v1956 = vadd.f32 0.0, %v1955
          %v1957 = vpop.f32.mrf.mxu0
          %v1958 = vadd.f32 0.0, %v1957
          %1959 = vmatmul.bf16.gmra.mxu0 %v1855
          %v1960 = vpop.f32.mrf.mxu0
          %v1961 = vadd.f32 0.0, %v1960
          %v1962 = vpop.f32.mrf.mxu0
          %v1963 = vadd.f32 0.0, %v1962
          %1964 = vmatmul.bf16.gmra.mxu0 %v1856
          %v1965 = vpop.f32.mrf.mxu0
          %v1966 = vadd.f32 0.0, %v1965
          %v1967 = vpop.f32.mrf.mxu0
          %v1968 = vadd.f32 0.0, %v1967
          %1969 = vmatmul.bf16.gmra.mxu0 %v1857
          %v1970 = vpop.f32.mrf.mxu0
          %v1971 = vadd.f32 0.0, %v1970
          %v1972 = vpop.f32.mrf.mxu0
          %v1973 = vadd.f32 0.0, %v1972
          %1974 = vmatmul.bf16.gmra.mxu0 %v1858
          %v1975 = vpop.f32.mrf.mxu0
          %v1976 = vadd.f32 0.0, %v1975
          %v1977 = vpop.f32.mrf.mxu0
          %v1978 = vadd.f32 0.0, %v1977
          %1979 = vmatmul.bf16.gmra.mxu0 %v1859
          %v1980 = vpop.f32.mrf.mxu0
          %v1981 = vadd.f32 0.0, %v1980
          %v1982 = vpop.f32.mrf.mxu0
          %v1983 = vadd.f32 0.0, %v1982
          %1984 = vmatmul.bf16.gmra.mxu0 %v1860
          %v1985 = vpop.f32.mrf.mxu0
          %v1986 = vadd.f32 0.0, %v1985
          %v1987 = vpop.f32.mrf.mxu0
          %v1988 = vadd.f32 0.0, %v1987
          %1989 = vdwg.mxu0
          %v1990 = vadd.f32 %v1861, %v1951
          %v1991 = vadd.f32 %v1862, %v1953
          %v1992 = vadd.f32 %v1863, %v1956
          %v1993 = vadd.f32 %v1864, %v1958
          %v1994 = vadd.f32 %v1865, %v1961
          %v1995 = vadd.f32 %v1866, %v1963
          %v1996 = vadd.f32 %v1867, %v1966
          %v1997 = vadd.f32 %v1868, %v1968
          %v1998 = vadd.f32 %v1869, %v1971
          %v1999 = vadd.f32 %v1870, %v1973
          %v2000 = vadd.f32 %v1871, %v1976
          %v2001 = vadd.f32 %v1872, %v1978
          %v2002 = vadd.f32 %v1873, %v1981
          %v2003 = vadd.f32 %v1874, %v1983
          %v2004 = vadd.f32 %v1875, %v1986
          %v2005 = vadd.f32 %v1876, %v1988
          %v2006 = vmax.f32 %v1990, 0.0
          %v2007 = vmax.f32 %v1991, 0.0
          %v2008 = vmax.f32 %v1992, 0.0
          %v2009 = vmax.f32 %v1993, 0.0
          %v2010 = vmax.f32 %v1994, 0.0
          %v2011 = vmax.f32 %v1995, 0.0
          %v2012 = vmax.f32 %v1996, 0.0
          %v2013 = vmax.f32 %v1997, 0.0
          %v2014 = vmax.f32 %v1998, 0.0
          %v2015 = vmax.f32 %v1999, 0.0
          %v2016 = vmax.f32 %v2000, 0.0
          %v2017 = vmax.f32 %v2001, 0.0
          %v2018 = vmax.f32 %v2002, 0.0
          %v2019 = vmax.f32 %v2003, 0.0
          %v2020 = vmax.f32 %v2004, 0.0
          %v2021 = vmax.f32 %v2005, 0.0
          %v2022 = vpack.c.bf16 %v2006, %v2006
          %v2023 = vpack.c.bf16 %v2007, %v2007
          %v2024 = vpack.c.bf16 %v2008, %v2008
          %v2025 = vpack.c.bf16 %v2009, %v2009
          %v2026 = vpack.c.bf16 %v2010, %v2010
          %v2027 = vpack.c.bf16 %v2011, %v2011
          %v2028 = vpack.c.bf16 %v2012, %v2012
          %v2029 = vpack.c.bf16 %v2013, %v2013
          %v2030 = vpack.c.bf16 %v2014, %v2014
          %v2031 = vpack.c.bf16 %v2015, %v2015
          %v2032 = vpack.c.bf16 %v2016, %v2016
          %v2033 = vpack.c.bf16 %v2017, %v2017
          %v2034 = vpack.c.bf16 %v2018, %v2018
          %v2035 = vpack.c.bf16 %v2019, %v2019
          %v2036 = vpack.c.bf16 %v2020, %v2020
          %v2037 = vpack.c.bf16 %v2021, %v2021
          %2038 = vst [vmem:[%s419 + $0x40] sm:$0xf] %v2022
          %2039 = vst [vmem:[%s419 + $0x44] sm:$0xf] %v2023
          %2040 = vst [vmem:[%s419 + $0x48] sm:$0xf] %v2024
          %2041 = vst [vmem:[%s419 + $0x4c] sm:$0xf] %v2025
          %2042 = vst [vmem:[%s419 + $0x50] sm:$0xf] %v2026
          %2043 = vst [vmem:[%s419 + $0x54] sm:$0xf] %v2027
          %2044 = vst [vmem:[%s419 + $0x58] sm:$0xf] %v2028
          %2045 = vst [vmem:[%s419 + $0x5c] sm:$0xf] %v2029
          %2046 = vst [vmem:[%s419 + $0x60] sm:$0xf] %v2030
          %2047 = vst [vmem:[%s419 + $0x64] sm:$0xf] %v2031
          %2048 = vst [vmem:[%s419 + $0x68] sm:$0xf] %v2032
          %2049 = vst [vmem:[%s419 + $0x6c] sm:$0xf] %v2033
          %2050 = vst [vmem:[%s419 + $0x70] sm:$0xf] %v2034
          %2051 = vst [vmem:[%s419 + $0x74] sm:$0xf] %v2035
          %2052 = vst [vmem:[%s419 + $0x78] sm:$0xf] %v2036
          %2053 = vst [vmem:[%s419 + $0x7c] sm:$0xf] %v2037
        $region72: #{tpu_custom_call.1} parent=47 // pred_fallthru
          _
        %s2054 = sand.u32 %s240, 1
        %s2055 = scalar_lea.sflag [#allocation9], %s2054
        %s2056 = sand.u32 %s240, 1
        %s2057 = smul.addr %s2056, 128
        %s2058 = scalar_lea.vmem [#allocation13], %s2057
        // Predicated region
        $region73: #{tpu_custom_call.1} parent=47 // pred_check
          %p2059 = pneg %p250
        $region74: #{tpu_custom_call.1} parent=47 // pred_check_branch
          %2061 = sbr.rel (%p2059) target = $region76
        $region75: #{tpu_custom_call.1} parent=47 // pred_region
          %s2062 = smul.u32 32, %s44
          %2064 = vsyncadd %s2055, 0
          %s2065 = smul.addr %s2062, 4
          %s2066 = scalar_lea.hbm %s9, %s2065
          %s2067 = sshll.u32 %s2058, 4
          %s2068 = int_to_ptr.vmem [resolvable:$true] %s2067
          %s2069 = sshll.u32 %s2066, 4
          %s2070 = int_to_ptr.hbm [resolvable:$true] %s2069
          %2075 = dma.vmem_to_hbm [thread:$0]  %s2068, 2048, %s2070, %s2055, 64, 64, 4
        $region76: #{tpu_custom_call.1} parent=47 // pred_fallthru
          _
      $region48: #{tpu_custom_call.1} parent=5 // pred_fallthru
        _
      %p2076 = scmp.le.s32.totalorder 2, %s35
      // Predicated region
      $region77: #{tpu_custom_call.1} parent=5 // pred_check
        %p2077 = pneg %p2076
      $region78: #{tpu_custom_call.1} parent=5 // pred_check_branch
        %2079 = sbr.rel (%p2077) target = $region80
      $region79: #{tpu_custom_call.1} parent=5 // pred_region
        %s2080 = ssub.s32 %s35, 2
        // Predicated region
        $region81: #{tpu_custom_call.1} parent=79 // pred_check
          %p2081 = pneg %p256
        $region82: #{tpu_custom_call.1} parent=79 // pred_check_branch
          %2083 = sbr.rel (%p2081) target = $region84
        $region83: #{tpu_custom_call.1} parent=79 // pred_region
          %s2084 = sand.u32 %s241, 1
          %s2085 = scalar_lea.sflag [#allocation9], %s2084
          %s2086 = sand.u32 %s241, 1
          %s2087 = smul.addr %s2086, 128
          %s2088 = scalar_lea.vmem [#allocation13], %s2087
          %2090 = dma.done %s2085, 2048
        $region84: #{tpu_custom_call.1} parent=79 // pred_fallthru
          _
      $region80: #{tpu_custom_call.1} parent=5 // pred_fallthru
        _
    $region6: #{tpu_custom_call.1} parent=1 // loop_footer
      %s39 = sadd.s32 1, %s35
    $region7: #{tpu_custom_call.1} parent=1 // loop_footer_branch
      %34 = sbr.rel target = $region3
    $region8: #{tpu_custom_call.1} parent=1 // loop_exit
      _
    %2091 = vsyncpa [#allocation8], 1
    %s2092 = scalar_lea.sflag [#allocation8], 1
    %2093 = vsyncpa %s2092, 1
    %2094 = vsyncpa [#allocation11], 1
    %2095 = vsyncpa [#allocation9], 1
    %s2096 = scalar_lea.sflag [#allocation9], 1
    %2097 = vsyncpa %s2096, 1

</llo_original>
